<compile_context>
chip_gen: v5e
topology: v5e:2x2
jax: 0.10.0
libtpu: 0.0.40
codegen_flags: <defaults>
</compile_context>

<pallas_src>
import jax
import jax.numpy as jnp
from jax import lax
from jax.experimental import pallas as pl
from jax.experimental.pallas import tpu as pltpu


# --------------------------------------------------------------------------
# Kernels
# --------------------------------------------------------------------------
def _encoder_kernel(a_ref, x_ref, w0_ref, b0_ref, w12_ref, b12_ref,
                    noise_ref, z_ref, zbf_ref):
    """Fused 3-layer GraphConv encoder + reparameterization -> z (f32 + bf16)."""
    a_bf = a_ref[...]                                  # bf16 (cast in wrapper)

    # ---- GraphConv layer 0: relu(A @ (X @ W0) + b0) ------------------------
    xw0 = jnp.dot(x_ref[...], w0_ref[...],             # bf16 x bf16 -> f32 acc
                  preferred_element_type=jnp.float32)
    h0 = jnp.dot(a_bf, xw0.astype(jnp.bfloat16),
                 preferred_element_type=jnp.float32) + b0_ref[...]
    h0 = jnp.maximum(h0, 0.0)                          # f32 on the VPU

    # ---- GraphConv layers 1+2 fused: A @ (h0 @ [W1||W2]) + [b1||b2] --------
    hw = jnp.dot(h0.astype(jnp.bfloat16), w12_ref[...],
                 preferred_element_type=jnp.float32)
    ms = jnp.dot(a_bf, hw.astype(jnp.bfloat16),
                 preferred_element_type=jnp.float32) + b12_ref[...]

    h2p = ms.shape[1] // 2                             # 128-aligned split
    mean = ms[:, :h2p]
    log_std = ms[:, h2p:]

    # ---- Reparameterization: z = mean + noise * exp(log_std) ---------------
    z = mean + noise_ref[...] * jnp.exp(log_std)
    z_ref[...] = z                                     # f32 (returned to user)
    zbf_ref[...] = z.astype(jnp.bfloat16)              # bf16 (fed to decoder)


def _decoder_kernel(zr_ref, zc_ref, adj_ref):
    """One (TM, TN) tile of adj_rec = sigmoid(z @ z.T)."""
    # Contract over the trailing feature dim of BOTH bf16 operands: no z.T copy.
    logits = lax.dot_general(zr_ref[...], zc_ref[...],
                             dimension_numbers=(((1,), (1,)), ((), ())),
                             preferred_element_type=jnp.float32)
    # sigmoid(x) = 1 / (1 + exp(-x)); exp on EUP; exact divide keeps the
    # result in [0, 1] (approx vrcp could marginally exceed 1.0).
    e = jnp.exp(-logits)
    adj_ref[...] = 1.0 / (1.0 + e)


# --------------------------------------------------------------------------
# Wrapper
# --------------------------------------------------------------------------
def _round_up(x, m):
    return ((x + m - 1) // m) * m


def _pad2d(x, rows, cols):
    r, c = x.shape
    return jnp.pad(x, ((0, rows - r), (0, cols - c)))


def vgae_forward(a_norm, features, params, noise):
    """Fused VGAE forward pass on TPU via Pallas.

    Returns (adj_rec [N, N] float32, z [N, hidden2] float32).
    """
    n, in_dim = features.shape
    w0, b0, w1, b1, w2, b2 = params
    h1 = w0.shape[1]
    h2 = w1.shape[1]

    # Decoder tiles: 256 rows (fills the 256-wide MXU on v6e/v7x) x widest
    # lane-dense column tile that divides the padded node count.
    dec_tm = 256
    np_ = _round_up(n, dec_tm)
    dec_tn = 512 if np_ % 512 == 0 else 256

    inp = _round_up(in_dim, 128)
    h1p = _round_up(h1, 128)
    h2p = _round_up(h2, 128)

    # bf16 for all MXU-streamed operands (cast once, here); f32 elsewhere.
    a_p = _pad2d(a_norm, np_, np_).astype(jnp.bfloat16)
    x_p = _pad2d(features, np_, inp).astype(jnp.bfloat16)
    w0_p = _pad2d(w0, inp, h1p).astype(jnp.bfloat16)
    w12_p = jnp.concatenate([_pad2d(w1, h1p, h2p),
                             _pad2d(w2, h1p, h2p)], axis=1).astype(jnp.bfloat16)
    b0_p = _pad2d(b0.reshape(1, -1).astype(jnp.float32), 1, h1p)
    b12_p = jnp.concatenate([_pad2d(b1.reshape(1, -1).astype(jnp.float32), 1, h2p),
                             _pad2d(b2.reshape(1, -1).astype(jnp.float32), 1, h2p)],
                            axis=1)
    noise_p = _pad2d(noise.astype(jnp.float32), np_, h2p)

    vmem = pl.BlockSpec(memory_space=pltpu.MemorySpace.VMEM)
    vmem_limit = 48 * 1024 * 1024  # leave headroom below v7x's 64 MiB physical

    # ---------------- Encoder: one fused call, everything VMEM-resident -----
    # TODO(synk): row-grid this call (xw0 -> hw -> z stages) for N >~ 4k.
    enc_cost = pl.CostEstimate(
        flops=int(2 * np_ * inp * h1p + 2 * np_ * np_ * h1p
                  + 2 * np_ * h1p * 2 * h2p + 2 * np_ * np_ * 2 * h2p),
        transcendentals=int(np_ * h2p),
        bytes_accessed=int(2 * (np_ * np_ + np_ * inp + inp * h1p
                                + h1p * 2 * h2p)
                           + 4 * (2 * np_ * h2p) + 6 * np_ * h2p),
    )
    z_p, z_bf = pl.pallas_call(
        _encoder_kernel,
        out_shape=(jax.ShapeDtypeStruct((np_, h2p), jnp.float32),
                   jax.ShapeDtypeStruct((np_, h2p), jnp.bfloat16)),
        in_specs=[vmem] * 7,
        out_specs=(vmem, vmem),
        compiler_params=pltpu.CompilerParams(vmem_limit_bytes=vmem_limit),
        cost_estimate=enc_cost,
    )(a_p, x_p, w0_p, b0_p, w12_p, b12_p, noise_p)

    # ---------------- Decoder: 2-D grid, lane-dense (dec_tm, dec_tn) tiles --
    gm = np_ // dec_tm
    gn = np_ // dec_tn
    dec_cost = pl.CostEstimate(
        flops=int(2 * np_ * np_ * h2p),
        transcendentals=int(np_ * np_),
        bytes_accessed=int(2 * np_ * h2p * (1 + gm) + 4 * np_ * np_),
    )
    adj_p = pl.pallas_call(
        _decoder_kernel,
        out_shape=jax.ShapeDtypeStruct((np_, np_), jnp.float32),
        grid_spec=pltpu.PrefetchScalarGridSpec(
            num_scalar_prefetch=0,
            grid=(gm, gn),
            in_specs=[pl.BlockSpec((dec_tm, h2p), lambda i, j: (i, 0)),
                      pl.BlockSpec((dec_tn, h2p), lambda i, j: (j, 0))],
            out_specs=pl.BlockSpec((dec_tm, dec_tn), lambda i, j: (i, j)),
        ),
        compiler_params=pltpu.CompilerParams(
            dimension_semantics=("parallel", "parallel"),
            vmem_limit_bytes=vmem_limit),
        cost_estimate=dec_cost,
    )(z_bf, z_bf)

    return adj_p[:n, :n], z_p[:n, :h2]


# --------------------------------------------------------------------------
# Deterministic setup helpers
# --------------------------------------------------------------------------
def make_params(key, in_dim, hidden1_dim, hidden2_dim):
    ks = jax.random.split(key, 3)

    def glorot(k, fan_in, fan_out):
        scale = jnp.sqrt(6.0 / (fan_in + fan_out))
        return jax.random.uniform(k, (fan_in, fan_out), jnp.float32,
                                  minval=-scale, maxval=scale)

    w0 = glorot(ks[0], in_dim, hidden1_dim)
    b0 = jnp.zeros((hidden1_dim,), jnp.float32)
    w1 = glorot(ks[1], hidden1_dim, hidden2_dim)
    b1 = jnp.zeros((hidden2_dim,), jnp.float32)
    w2 = glorot(ks[2], hidden1_dim, hidden2_dim)
    b2 = jnp.zeros((hidden2_dim,), jnp.float32)
    return (w0, b0, w1, b1, w2, b2)


def make_graph(n):
    """Undirected ring graph with self-loops; returns D^-1/2 A D^-1/2."""
    idx = jnp.arange(n)
    a = jnp.zeros((n, n), jnp.float32)
    a = a.at[idx, idx].set(1.0)
    a = a.at[idx, (idx + 1) % n].set(1.0)
    a = a.at[(idx + 1) % n, idx].set(1.0)
    deg = a.sum(axis=1)
    d_inv_sqrt = jnp.where(deg > 0, 1.0 / jnp.sqrt(deg), 0.0)
    return a * d_inv_sqrt[:, None] * d_inv_sqrt[None, :]


def _reference(a_norm, features, params, noise):
    """Pure-JAX f32 reference of the same forward pass."""
    w0, b0, w1, b1, w2, b2 = params
    h0 = jnp.maximum(a_norm @ (features @ w0) + b0, 0.0)
    mean = a_norm @ (h0 @ w1) + b1
    log_std = a_norm @ (h0 @ w2) + b2
    z = mean + noise * jnp.exp(log_std)
    adj = jax.nn.sigmoid(z @ z.T)
    return adj, z


# --------------------------------------------------------------------------
if __name__ == "__main__":
    import numpy as np

    # Small-but-meaningful shapes: 256 nodes, features 16 -> 32 -> 16.
    N, IN_DIM, H1, H2 = 256, 16, 32, 16

    key = jax.random.PRNGKey(0)
    k_feat, k_param, k_noise = jax.random.split(key, 3)

    features = jax.random.normal(k_feat, (N, IN_DIM), jnp.float32)
    params = make_params(k_param, IN_DIM, H1, H2)
    a_norm = make_graph(N)
    noise = jax.random.normal(k_noise, (N, H2), jnp.float32)  # torch.randn equiv

    adj_rec, z = vgae_forward(a_norm, features, params, noise)
    jax.block_until_ready((adj_rec, z))

    # Shape / sanity checks.
    assert adj_rec.shape == (N, N) and z.shape == (N, H2)
    assert bool(jnp.all(jnp.isfinite(adj_rec))) and bool(jnp.all(jnp.isfinite(z)))
    assert bool(jnp.all(adj_rec >= 0.0)) and bool(jnp.all(adj_rec <= 1.0))

    # Loose numerical check vs. f32 reference (bf16 MXU operands).
    adj_ref, z_ref = _reference(a_norm, features, params, noise)
    np.testing.assert_allclose(np.asarray(adj_rec), np.asarray(adj_ref),
                               atol=0.1, rtol=0.0)
    np.testing.assert_allclose(np.asarray(z), np.asarray(z_ref),
                               atol=0.25, rtol=0.25)

    print("KERNEL_OK")
</pallas_src>

<mosaic_0001>
module attributes {stable_mosaic.version = 11 : i64} {
  func.func @_encoder_kernel(%arg0: memref<256x256xbf16, #tpu.memory_space<vmem>>, %arg1: memref<256x128xbf16, #tpu.memory_space<vmem>>, %arg2: memref<128x128xbf16, #tpu.memory_space<vmem>>, %arg3: memref<1x128xf32, #tpu.memory_space<vmem>>, %arg4: memref<128x256xbf16, #tpu.memory_space<vmem>>, %arg5: memref<1x256xf32, #tpu.memory_space<vmem>>, %arg6: memref<256x128xf32, #tpu.memory_space<vmem>>, %arg7: memref<256x128xf32, #tpu.memory_space<vmem>>, %arg8: memref<256x128xbf16, #tpu.memory_space<vmem>>) attributes {dimension_semantics = [], scalar_prefetch = 0 : i64, scratch_operands = 0 : i64, tpu.core_type = #tpu.core_type<tc>} {
    %c0 = arith.constant 0 : index
    %c0_0 = arith.constant 0 : index
    %0 = vector.load %arg0[%c0, %c0_0] : memref<256x256xbf16, #tpu.memory_space<vmem>>, vector<256x256xbf16>
    %c0_1 = arith.constant 0 : index
    %c0_2 = arith.constant 0 : index
    %1 = vector.load %arg1[%c0_1, %c0_2] : memref<256x128xbf16, #tpu.memory_space<vmem>>, vector<256x128xbf16>
    %c0_3 = arith.constant 0 : index
    %c0_4 = arith.constant 0 : index
    %2 = vector.load %arg2[%c0_3, %c0_4] : memref<128x128xbf16, #tpu.memory_space<vmem>>, vector<128x128xbf16>
    %cst = arith.constant dense<0.000000e+00> : vector<256x128xf32>
    %3 = tpu.matmul %1, %2, %cst {dimension_numbers = #tpu.dot_dimension_numbers<[1], [0], [0], [1], [0, 0, 1, 1], [], []>} : vector<256x128xbf16>, vector<128x128xbf16>, vector<256x128xf32> -> vector<256x128xf32>
    %4 = arith.truncf %3 : vector<256x128xf32> to vector<256x128xbf16>
    %cst_5 = arith.constant dense<0.000000e+00> : vector<256x128xf32>
    %5 = tpu.matmul %0, %4, %cst_5 {dimension_numbers = #tpu.dot_dimension_numbers<[1], [0], [0], [1], [0, 0, 1, 1], [], []>} : vector<256x256xbf16>, vector<256x128xbf16>, vector<256x128xf32> -> vector<256x128xf32>
    %c0_6 = arith.constant 0 : index
    %c0_7 = arith.constant 0 : index
    %6 = vector.load %arg3[%c0_6, %c0_7] : memref<1x128xf32, #tpu.memory_space<vmem>>, vector<1x128xf32>
    %7 = vector.broadcast %6 : vector<1x128xf32> to vector<256x128xf32>
    %8 = arith.addf %5, %7 : vector<256x128xf32>
    %cst_8 = arith.constant 0.000000e+00 : f32
    %9 = vector.broadcast %cst_8 : f32 to vector<256x128xf32>
    %10 = arith.maximumf %8, %9 : vector<256x128xf32>
    %11 = arith.truncf %10 : vector<256x128xf32> to vector<256x128xbf16>
    %c0_9 = arith.constant 0 : index
    %c0_10 = arith.constant 0 : index
    %12 = vector.load %arg4[%c0_9, %c0_10] : memref<128x256xbf16, #tpu.memory_space<vmem>>, vector<128x256xbf16>
    %cst_11 = arith.constant dense<0.000000e+00> : vector<256x256xf32>
    %13 = tpu.matmul %11, %12, %cst_11 {dimension_numbers = #tpu.dot_dimension_numbers<[1], [0], [0], [1], [0, 0, 1, 1], [], []>} : vector<256x128xbf16>, vector<128x256xbf16>, vector<256x256xf32> -> vector<256x256xf32>
    %14 = arith.truncf %13 : vector<256x256xf32> to vector<256x256xbf16>
    %cst_12 = arith.constant dense<0.000000e+00> : vector<256x256xf32>
    %15 = tpu.matmul %0, %14, %cst_12 {dimension_numbers = #tpu.dot_dimension_numbers<[1], [0], [0], [1], [0, 0, 1, 1], [], []>} : vector<256x256xbf16>, vector<256x256xbf16>, vector<256x256xf32> -> vector<256x256xf32>
    %c0_13 = arith.constant 0 : index
    %c0_14 = arith.constant 0 : index
    %16 = vector.load %arg5[%c0_13, %c0_14] : memref<1x256xf32, #tpu.memory_space<vmem>>, vector<1x256xf32>
    %17 = vector.broadcast %16 : vector<1x256xf32> to vector<256x256xf32>
    %18 = arith.addf %15, %17 : vector<256x256xf32>
    %19 = vector.extract_strided_slice %18 {offsets = [0, 0], sizes = [256, 128], strides = [1, 1]} : vector<256x256xf32> to vector<256x128xf32>
    %20 = vector.extract_strided_slice %18 {offsets = [0, 128], sizes = [256, 128], strides = [1, 1]} : vector<256x256xf32> to vector<256x128xf32>
    %c0_15 = arith.constant 0 : index
    %c0_16 = arith.constant 0 : index
    %21 = vector.load %arg6[%c0_15, %c0_16] : memref<256x128xf32, #tpu.memory_space<vmem>>, vector<256x128xf32>
    %22 = math.exp %20 : vector<256x128xf32>
    %23 = arith.mulf %21, %22 : vector<256x128xf32>
    %24 = arith.addf %19, %23 : vector<256x128xf32>
    %c0_17 = arith.constant 0 : index
    %c0_18 = arith.constant 0 : index
    %25 = vector.load %arg7[%c0_17, %c0_18] : memref<256x128xf32, #tpu.memory_space<vmem>>, vector<256x128xf32>
    tpu.vector_store %arg7[%c0_17, %c0_18], %24 {strides = array<i32>} : memref<256x128xf32, #tpu.memory_space<vmem>>, vector<256x128xf32>,
    %26 = arith.truncf %24 : vector<256x128xf32> to vector<256x128xbf16>
    %c0_19 = arith.constant 0 : index
    %c0_20 = arith.constant 0 : index
    %27 = vector.load %arg8[%c0_19, %c0_20] : memref<256x128xbf16, #tpu.memory_space<vmem>>, vector<256x128xbf16>
    tpu.vector_store %arg8[%c0_19, %c0_20], %26 {strides = array<i32>} : memref<256x128xbf16, #tpu.memory_space<vmem>>, vector<256x128xbf16>,
    return
  }
}

</mosaic_0001>

<llo_original>
// kernel: tpu_custom_call.1
$region0: #{tpu_custom_call.1}
  #allocation0 [shape = 'u32[]', space=smem, size = 0x4, offset = 0x4, fixed_abs, tag = 'smem constant byte address 0x4 - core index']
  #allocation1 [shape = 'u32[72,128]{1,0:T(1,128)}', space=vmem, size = 0x9000, scoped, tag = 'internal scratch']
  %s0 = inlined_call_operand.hbm [shape: bf16[256,256], index: 0, kind: input, shape index: {}]
  %s1 = inlined_call_operand.hbm [shape: bf16[256,128], index: 1, kind: input, shape index: {}]
  %s2 = inlined_call_operand.hbm [shape: bf16[128,128], index: 2, kind: input, shape index: {}]
  %s3 = inlined_call_operand.vmem [shape: f32[1,128], index: 3, kind: input, shape index: {}]
  %s4 = inlined_call_operand.hbm [shape: bf16[128,256], index: 4, kind: input, shape index: {}]
  %s5 = inlined_call_operand.vmem [shape: f32[1,256], index: 5, kind: input, shape index: {}]
  %s6 = inlined_call_operand.hbm [shape: f32[256,128], index: 6, kind: input, shape index: {}]
  %s7 = inlined_call_operand.hbm [shape: f32[256,128], index: 7, kind: output, shape index: {0}]
  %s8 = inlined_call_operand.hbm [shape: bf16[256,128], index: 8, kind: output, shape index: {1}]
  %9 = xla_tuple %s7, %s8
  %s10 = sld [smem:[#allocation0]]
  $region66: #{tpu_custom_call.1} parent=0
    _
  %s12 = ssub.s32 1, %s10
  %s13 = scalar_select 0, %s12, %s10
  $region1: #{tpu_custom_call.1} parent=0
    #allocation2 [shape = 'u8[131072]{0}', space=vmem, size = 0x20000, scoped, tag = 'input window, operand 0, single buffered']
    #allocation3 [shape = 's32[1]{0}', space=sflag, size = 0x4, scoped, tag = 'scoped memory for tpu_custom_call.1']
    #allocation4 [shape = 's32[1]{0}', space=sflag, size = 0x4, scoped, tag = 'scoped memory for tpu_custom_call.1']
    #allocation5 [shape = 'u8[65536]{0}', space=vmem, size = 0x10000, scoped, tag = 'input window, operand 1, single buffered']
    #allocation6 [shape = 's32[1]{0}', space=sflag, size = 0x4, scoped, tag = 'scoped memory for tpu_custom_call.1']
    #allocation7 [shape = 'u8[32768]{0}', space=vmem, size = 0x8000, scoped, tag = 'input window, operand 2, single buffered']
    #allocation8 [shape = 'u8[65536]{0}', space=vmem, size = 0x10000, scoped, tag = 'input window, operand 4, single buffered']
    #allocation9 [shape = 's32[1]{0}', space=sflag, size = 0x4, scoped, tag = 'scoped memory for tpu_custom_call.1']
    #allocation10 [shape = 'u8[131072]{0}', space=vmem, size = 0x20000, scoped, tag = 'input window, operand 6, single buffered']
    #allocation11 [shape = 'u8[131072]{0}', space=vmem, size = 0x20000, scoped, tag = 'output window, operand 0, single buffered']
    #allocation12 [shape = 'u8[65536]{0}', space=vmem, size = 0x10000, scoped, tag = 'output window, operand 1, single buffered']
    #allocation13 [shape = 's32[1]{0}', space=sflag, size = 0x4, scoped, tag = 'scoped memory for tpu_custom_call.1']
    %14 = vsyncpa [#allocation3], 0
    %15 = vsyncpa [#allocation6], 0
    %16 = vsyncpa [#allocation9], 0
    %17 = vsyncpa [#allocation4], 0
    %18 = vsyncpa [#allocation13], 0
    // Predicated region
    $region2: #{tpu_custom_call.1} parent=1 // pred_check
      _
    $region3: #{tpu_custom_call.1} parent=1 // pred_check_branch
      %20 = sbr.rel (0) target = $region5
    $region4: #{tpu_custom_call.1} parent=1 // pred_region
      %22 = vsyncadd [#allocation3], 0
      %s23 = sshll.u32 %s0, 4
      %s24 = int_to_ptr.hbm [resolvable:$true] %s23
      %s25 = sshll.u32 [#allocation2], 4
      %s26 = int_to_ptr.vmem [resolvable:$true] %s25
      %31 = dma.hbm_to_vmem [thread:$0]  %s24, 4096, %s26, [#allocation3], 128, 128, 8
    $region5: #{tpu_custom_call.1} parent=1 // pred_fallthru
      _
    // Predicated region
    $region6: #{tpu_custom_call.1} parent=1 // pred_check
      _
    $region7: #{tpu_custom_call.1} parent=1 // pred_check_branch
      %33 = sbr.rel (0) target = $region9
    $region8: #{tpu_custom_call.1} parent=1 // pred_region
      %35 = vsyncadd [#allocation6], 0
      %s36 = sshll.u32 %s1, 4
      %s37 = int_to_ptr.hbm [resolvable:$true] %s36
      %s38 = sshll.u32 [#allocation5], 4
      %s39 = int_to_ptr.vmem [resolvable:$true] %s38
      %44 = dma.hbm_to_vmem [thread:$0]  %s37, 2048, %s39, [#allocation6], 64, 64, 4
    $region9: #{tpu_custom_call.1} parent=1 // pred_fallthru
      _
    // Predicated region
    $region10: #{tpu_custom_call.1} parent=1 // pred_check
      _
    $region11: #{tpu_custom_call.1} parent=1 // pred_check_branch
      %46 = sbr.rel (0) target = $region13
    $region12: #{tpu_custom_call.1} parent=1 // pred_region
      %48 = vsyncadd [#allocation6], 0
      %s49 = sshll.u32 %s2, 4
      %s50 = int_to_ptr.hbm [resolvable:$true] %s49
      %s51 = sshll.u32 [#allocation7], 4
      %s52 = int_to_ptr.vmem [resolvable:$true] %s51
      %57 = dma.hbm_to_vmem [thread:$0]  %s50, 1024, %s52, [#allocation6], 64, 64, 4
    $region13: #{tpu_custom_call.1} parent=1 // pred_fallthru
      _
    // Predicated region
    $region14: #{tpu_custom_call.1} parent=1 // pred_check
      _
    $region15: #{tpu_custom_call.1} parent=1 // pred_check_branch
      %59 = sbr.rel (0) target = $region17
    $region16: #{tpu_custom_call.1} parent=1 // pred_region
      _
    $region17: #{tpu_custom_call.1} parent=1 // pred_fallthru
      _
    // Predicated region
    $region18: #{tpu_custom_call.1} parent=1 // pred_check
      _
    $region19: #{tpu_custom_call.1} parent=1 // pred_check_branch
      %61 = sbr.rel (0) target = $region21
    $region20: #{tpu_custom_call.1} parent=1 // pred_region
      %63 = vsyncadd [#allocation9], 0
      %s64 = sshll.u32 %s4, 4
      %s65 = int_to_ptr.hbm [resolvable:$true] %s64
      %s66 = sshll.u32 [#allocation8], 4
      %s67 = int_to_ptr.vmem [resolvable:$true] %s66
      %72 = dma.hbm_to_vmem [thread:$0]  %s65, 2048, %s67, [#allocation9], 128, 128, 8
    $region21: #{tpu_custom_call.1} parent=1 // pred_fallthru
      _
    // Predicated region
    $region22: #{tpu_custom_call.1} parent=1 // pred_check
      _
    $region23: #{tpu_custom_call.1} parent=1 // pred_check_branch
      %74 = sbr.rel (0) target = $region25
    $region24: #{tpu_custom_call.1} parent=1 // pred_region
      _
    $region25: #{tpu_custom_call.1} parent=1 // pred_fallthru
      _
    // Predicated region
    $region26: #{tpu_custom_call.1} parent=1 // pred_check
      _
    $region27: #{tpu_custom_call.1} parent=1 // pred_check_branch
      %76 = sbr.rel (0) target = $region29
    $region28: #{tpu_custom_call.1} parent=1 // pred_region
      %78 = vsyncadd [#allocation9], 0
      %s79 = sshll.u32 %s6, 4
      %s80 = int_to_ptr.hbm [resolvable:$true] %s79
      %s81 = sshll.u32 [#allocation10], 4
      %s82 = int_to_ptr.vmem [resolvable:$true] %s81
      %87 = dma.hbm_to_vmem [thread:$0]  %s80, 4096, %s82, [#allocation9], 128, 128, 8
    $region29: #{tpu_custom_call.1} parent=1 // pred_fallthru
      _
    // Predicated region
    $region30: #{tpu_custom_call.1} parent=1 // pred_check
      _
    $region31: #{tpu_custom_call.1} parent=1 // pred_check_branch
      %89 = sbr.rel (0) target = $region33
    $region32: #{tpu_custom_call.1} parent=1 // pred_region
      %91 = dma.done [#allocation3], 4096
    $region33: #{tpu_custom_call.1} parent=1 // pred_fallthru
      _
    // Predicated region
    $region34: #{tpu_custom_call.1} parent=1 // pred_check
      _
    $region35: #{tpu_custom_call.1} parent=1 // pred_check_branch
      %93 = sbr.rel (0) target = $region37
    $region36: #{tpu_custom_call.1} parent=1 // pred_region
      %95 = dma.done [#allocation6], 2048
    $region37: #{tpu_custom_call.1} parent=1 // pred_fallthru
      _
    // Predicated region
    $region38: #{tpu_custom_call.1} parent=1 // pred_check
      _
    $region39: #{tpu_custom_call.1} parent=1 // pred_check_branch
      %97 = sbr.rel (0) target = $region41
    $region40: #{tpu_custom_call.1} parent=1 // pred_region
      %99 = dma.done [#allocation6], 1024
    $region41: #{tpu_custom_call.1} parent=1 // pred_fallthru
      _
    // Predicated region
    $region42: #{tpu_custom_call.1} parent=1 // pred_check
      _
    $region43: #{tpu_custom_call.1} parent=1 // pred_check_branch
      %101 = sbr.rel (0) target = $region45
    $region44: #{tpu_custom_call.1} parent=1 // pred_region
      %103 = dma.done [#allocation9], 2048
    $region45: #{tpu_custom_call.1} parent=1 // pred_fallthru
      _
    // Predicated region
    $region46: #{tpu_custom_call.1} parent=1 // pred_check
      _
    $region47: #{tpu_custom_call.1} parent=1 // pred_check_branch
      %105 = sbr.rel (0) target = $region49
    $region48: #{tpu_custom_call.1} parent=1 // pred_region
      %107 = dma.done [#allocation9], 4096
    $region49: #{tpu_custom_call.1} parent=1 // pred_fallthru
      _
    %v108 = vld [vmem:[#allocation2] sm:$0xff]
    %v109 = vld [vmem:[#allocation2 + $0x8] sm:$0xff]
    %v110 = vld [vmem:[#allocation2 + $0x10] sm:$0xff]
    %v111 = vld [vmem:[#allocation2 + $0x18] sm:$0xff]
    %v112 = vld [vmem:[#allocation2 + $0x20] sm:$0xff]
    %v113 = vld [vmem:[#allocation2 + $0x28] sm:$0xff]
    %v114 = vld [vmem:[#allocation2 + $0x30] sm:$0xff]
    %v115 = vld [vmem:[#allocation2 + $0x38] sm:$0xff]
    %v116 = vld [vmem:[#allocation2 + $0x40] sm:$0xff]
    %v117 = vld [vmem:[#allocation2 + $0x48] sm:$0xff]
    %v118 = vld [vmem:[#allocation2 + $0x50] sm:$0xff]
    %v119 = vld [vmem:[#allocation2 + $0x58] sm:$0xff]
    %v120 = vld [vmem:[#allocation2 + $0x60] sm:$0xff]
    %v121 = vld [vmem:[#allocation2 + $0x68] sm:$0xff]
    %v122 = vld [vmem:[#allocation2 + $0x70] sm:$0xff]
    %v123 = vld [vmem:[#allocation2 + $0x78] sm:$0xff]
    %v124 = vld [vmem:[#allocation2 + $0x80] sm:$0xff]
    %v125 = vld [vmem:[#allocation2 + $0x88] sm:$0xff]
    %v126 = vld [vmem:[#allocation2 + $0x90] sm:$0xff]
    %v127 = vld [vmem:[#allocation2 + $0x98] sm:$0xff]
    %v128 = vld [vmem:[#allocation2 + $0xa0] sm:$0xff]
    %v129 = vld [vmem:[#allocation2 + $0xa8] sm:$0xff]
    %v130 = vld [vmem:[#allocation2 + $0xb0] sm:$0xff]
    %v131 = vld [vmem:[#allocation2 + $0xb8] sm:$0xff]
    %v132 = vld [vmem:[#allocation2 + $0xc0] sm:$0xff]
    %v133 = vld [vmem:[#allocation2 + $0xc8] sm:$0xff]
    %v134 = vld [vmem:[#allocation2 + $0xd0] sm:$0xff]
    %v135 = vld [vmem:[#allocation2 + $0xd8] sm:$0xff]
    %v136 = vld [vmem:[#allocation2 + $0xe0] sm:$0xff]
    %v137 = vld [vmem:[#allocation2 + $0xe8] sm:$0xff]
    %v138 = vld [vmem:[#allocation2 + $0xf0] sm:$0xff]
    %v139 = vld [vmem:[#allocation2 + $0xf8] sm:$0xff]
    %v140 = vld [vmem:[#allocation5] sm:$0xf]
    %v141 = vld [vmem:[#allocation5 + $0x4] sm:$0xf]
    %v142 = vld [vmem:[#allocation5 + $0x8] sm:$0xf]
    %v143 = vld [vmem:[#allocation5 + $0xc] sm:$0xf]
    %v144 = vld [vmem:[#allocation5 + $0x10] sm:$0xf]
    %v145 = vld [vmem:[#allocation5 + $0x14] sm:$0xf]
    %v146 = vld [vmem:[#allocation5 + $0x18] sm:$0xf]
    %v147 = vld [vmem:[#allocation5 + $0x1c] sm:$0xf]
    %v148 = vld [vmem:[#allocation5 + $0x20] sm:$0xf]
    %v149 = vld [vmem:[#allocation5 + $0x24] sm:$0xf]
    %v150 = vld [vmem:[#allocation5 + $0x28] sm:$0xf]
    %v151 = vld [vmem:[#allocation5 + $0x2c] sm:$0xf]
    %v152 = vld [vmem:[#allocation5 + $0x30] sm:$0xf]
    %v153 = vld [vmem:[#allocation5 + $0x34] sm:$0xf]
    %v154 = vld [vmem:[#allocation5 + $0x38] sm:$0xf]
    %v155 = vld [vmem:[#allocation5 + $0x3c] sm:$0xf]
    %v156 = vld [vmem:[#allocation5 + $0x40] sm:$0xf]
    %v157 = vld [vmem:[#allocation5 + $0x44] sm:$0xf]
    %v158 = vld [vmem:[#allocation5 + $0x48] sm:$0xf]
    %v159 = vld [vmem:[#allocation5 + $0x4c] sm:$0xf]
    %v160 = vld [vmem:[#allocation5 + $0x50] sm:$0xf]
    %v161 = vld [vmem:[#allocation5 + $0x54] sm:$0xf]
    %v162 = vld [vmem:[#allocation5 + $0x58] sm:$0xf]
    %v163 = vld [vmem:[#allocation5 + $0x5c] sm:$0xf]
    %v164 = vld [vmem:[#allocation5 + $0x60] sm:$0xf]
    %v165 = vld [vmem:[#allocation5 + $0x64] sm:$0xf]
    %v166 = vld [vmem:[#allocation5 + $0x68] sm:$0xf]
    %v167 = vld [vmem:[#allocation5 + $0x6c] sm:$0xf]
    %v168 = vld [vmem:[#allocation5 + $0x70] sm:$0xf]
    %v169 = vld [vmem:[#allocation5 + $0x74] sm:$0xf]
    %v170 = vld [vmem:[#allocation5 + $0x78] sm:$0xf]
    %v171 = vld [vmem:[#allocation5 + $0x7c] sm:$0xf]
    %v172 = vld [vmem:[#allocation7] sm:$0xf]
    %v173 = vld [vmem:[#allocation7 + $0x4] sm:$0xf]
    %v174 = vld [vmem:[#allocation7 + $0x8] sm:$0xf]
    %v175 = vld [vmem:[#allocation7 + $0xc] sm:$0xf]
    %v176 = vld [vmem:[#allocation7 + $0x10] sm:$0xf]
    %v177 = vld [vmem:[#allocation7 + $0x14] sm:$0xf]
    %v178 = vld [vmem:[#allocation7 + $0x18] sm:$0xf]
    %v179 = vld [vmem:[#allocation7 + $0x1c] sm:$0xf]
    %v180 = vld [vmem:[#allocation7 + $0x20] sm:$0xf]
    %v181 = vld [vmem:[#allocation7 + $0x24] sm:$0xf]
    %v182 = vld [vmem:[#allocation7 + $0x28] sm:$0xf]
    %v183 = vld [vmem:[#allocation7 + $0x2c] sm:$0xf]
    %v184 = vld [vmem:[#allocation7 + $0x30] sm:$0xf]
    %v185 = vld [vmem:[#allocation7 + $0x34] sm:$0xf]
    %v186 = vld [vmem:[#allocation7 + $0x38] sm:$0xf]
    %v187 = vld [vmem:[#allocation7 + $0x3c] sm:$0xf]
    %v220 = vunpack.c.l.b16 %v140
    %v221 = vunpack.c.l.b16 %v141
    %v222 = vunpack.c.l.b16 %v142
    %v223 = vunpack.c.l.b16 %v143
    %v224 = vunpack.c.l.b16 %v144
    %v225 = vunpack.c.l.b16 %v145
    %v226 = vunpack.c.l.b16 %v146
    %v227 = vunpack.c.l.b16 %v147
    %v228 = vunpack.c.l.b16 %v148
    %v229 = vunpack.c.l.b16 %v149
    %v230 = vunpack.c.l.b16 %v150
    %v231 = vunpack.c.l.b16 %v151
    %v232 = vunpack.c.l.b16 %v152
    %v233 = vunpack.c.l.b16 %v153
    %v234 = vunpack.c.l.b16 %v154
    %v235 = vunpack.c.l.b16 %v155
    %v236 = vunpack.c.l.b16 %v156
    %v237 = vunpack.c.l.b16 %v157
    %v238 = vunpack.c.l.b16 %v158
    %v239 = vunpack.c.l.b16 %v159
    %v240 = vunpack.c.l.b16 %v160
    %v241 = vunpack.c.l.b16 %v161
    %v242 = vunpack.c.l.b16 %v162
    %v243 = vunpack.c.l.b16 %v163
    %v244 = vunpack.c.l.b16 %v164
    %v245 = vunpack.c.l.b16 %v165
    %v246 = vunpack.c.l.b16 %v166
    %v247 = vunpack.c.l.b16 %v167
    %v248 = vunpack.c.l.b16 %v168
    %v249 = vunpack.c.l.b16 %v169
    %v250 = vunpack.c.l.b16 %v170
    %v251 = vunpack.c.l.b16 %v171
    %v252 = vpack.c.b16 %v221, %v220
    %v253 = vpack.c.b16 %v223, %v222
    %v254 = vpack.c.b16 %v225, %v224
    %v255 = vpack.c.b16 %v227, %v226
    %v256 = vpack.c.b16 %v229, %v228
    %v257 = vpack.c.b16 %v231, %v230
    %v258 = vpack.c.b16 %v233, %v232
    %v259 = vpack.c.b16 %v235, %v234
    %v260 = vpack.c.b16 %v237, %v236
    %v261 = vpack.c.b16 %v239, %v238
    %v262 = vpack.c.b16 %v241, %v240
    %v263 = vpack.c.b16 %v243, %v242
    %v264 = vpack.c.b16 %v245, %v244
    %v265 = vpack.c.b16 %v247, %v246
    %v266 = vpack.c.b16 %v249, %v248
    %v267 = vpack.c.b16 %v251, %v250
    %v300 = vunpack.c.l.b16 %v172
    %v301 = vunpack.c.l.b16 %v173
    %v302 = vunpack.c.l.b16 %v174
    %v303 = vunpack.c.l.b16 %v175
    %v304 = vunpack.c.l.b16 %v176
    %v305 = vunpack.c.l.b16 %v177
    %v306 = vunpack.c.l.b16 %v178
    %v307 = vunpack.c.l.b16 %v179
    %v308 = vunpack.c.l.b16 %v180
    %v309 = vunpack.c.l.b16 %v181
    %v310 = vunpack.c.l.b16 %v182
    %v311 = vunpack.c.l.b16 %v183
    %v312 = vunpack.c.l.b16 %v184
    %v313 = vunpack.c.l.b16 %v185
    %v314 = vunpack.c.l.b16 %v186
    %v315 = vunpack.c.l.b16 %v187
    %v316 = vpack.c.b16 %v301, %v300
    %v317 = vpack.c.b16 %v303, %v302
    %v318 = vpack.c.b16 %v305, %v304
    %v319 = vpack.c.b16 %v307, %v306
    %v320 = vpack.c.b16 %v309, %v308
    %v321 = vpack.c.b16 %v311, %v310
    %v322 = vpack.c.b16 %v313, %v312
    %v323 = vpack.c.b16 %v315, %v314
    %332 = vmatpush.bf16.msra.mxu0 %v323
    %333 = vmatpush.bf16.msra.mxu0 %v322
    %334 = vmatpush.bf16.msra.mxu0 %v321
    %335 = vmatpush.bf16.msra.mxu0 %v320
    %336 = vmatpush.bf16.msra.mxu0 %v319
    %337 = vmatpush.bf16.msra.mxu0 %v318
    %338 = vmatpush.bf16.msra.mxu0 %v317
    %339 = vmatpush.bf16.msra.mxu0 %v316
    %340 = vmatmul.bf16.gmra.mxu0 %v252
    %v341 = vpop.f32.mrf.mxu0
    %v342 = vadd.f32 0.0, %v341
    %v343 = vpop.f32.mrf.mxu0
    %v344 = vadd.f32 0.0, %v343
    %345 = vmatmul.bf16.gmra.mxu0 %v253
    %v346 = vpop.f32.mrf.mxu0
    %v347 = vadd.f32 0.0, %v346
    %v348 = vpop.f32.mrf.mxu0
    %v349 = vadd.f32 0.0, %v348
    %350 = vmatmul.bf16.gmra.mxu0 %v254
    %v351 = vpop.f32.mrf.mxu0
    %v352 = vadd.f32 0.0, %v351
    %v353 = vpop.f32.mrf.mxu0
    %v354 = vadd.f32 0.0, %v353
    %355 = vmatmul.bf16.gmra.mxu0 %v255
    %v356 = vpop.f32.mrf.mxu0
    %v357 = vadd.f32 0.0, %v356
    %v358 = vpop.f32.mrf.mxu0
    %v359 = vadd.f32 0.0, %v358
    %360 = vmatmul.bf16.gmra.mxu0 %v256
    %v361 = vpop.f32.mrf.mxu0
    %v362 = vadd.f32 0.0, %v361
    %v363 = vpop.f32.mrf.mxu0
    %v364 = vadd.f32 0.0, %v363
    %365 = vmatmul.bf16.gmra.mxu0 %v257
    %v366 = vpop.f32.mrf.mxu0
    %v367 = vadd.f32 0.0, %v366
    %v368 = vpop.f32.mrf.mxu0
    %v369 = vadd.f32 0.0, %v368
    %370 = vmatmul.bf16.gmra.mxu0 %v258
    %v371 = vpop.f32.mrf.mxu0
    %v372 = vadd.f32 0.0, %v371
    %v373 = vpop.f32.mrf.mxu0
    %v374 = vadd.f32 0.0, %v373
    %375 = vmatmul.bf16.gmra.mxu0 %v259
    %v376 = vpop.f32.mrf.mxu0
    %v377 = vadd.f32 0.0, %v376
    %v378 = vpop.f32.mrf.mxu0
    %v379 = vadd.f32 0.0, %v378
    %380 = vmatmul.bf16.gmra.mxu0 %v260
    %v381 = vpop.f32.mrf.mxu0
    %v382 = vadd.f32 0.0, %v381
    %v383 = vpop.f32.mrf.mxu0
    %v384 = vadd.f32 0.0, %v383
    %385 = vmatmul.bf16.gmra.mxu0 %v261
    %v386 = vpop.f32.mrf.mxu0
    %v387 = vadd.f32 0.0, %v386
    %v388 = vpop.f32.mrf.mxu0
    %v389 = vadd.f32 0.0, %v388
    %390 = vmatmul.bf16.gmra.mxu0 %v262
    %v391 = vpop.f32.mrf.mxu0
    %v392 = vadd.f32 0.0, %v391
    %v393 = vpop.f32.mrf.mxu0
    %v394 = vadd.f32 0.0, %v393
    %395 = vmatmul.bf16.gmra.mxu0 %v263
    %v396 = vpop.f32.mrf.mxu0
    %v397 = vadd.f32 0.0, %v396
    %v398 = vpop.f32.mrf.mxu0
    %v399 = vadd.f32 0.0, %v398
    %400 = vmatmul.bf16.gmra.mxu0 %v264
    %v401 = vpop.f32.mrf.mxu0
    %v402 = vadd.f32 0.0, %v401
    %v403 = vpop.f32.mrf.mxu0
    %v404 = vadd.f32 0.0, %v403
    %405 = vmatmul.bf16.gmra.mxu0 %v265
    %v406 = vpop.f32.mrf.mxu0
    %v407 = vadd.f32 0.0, %v406
    %v408 = vpop.f32.mrf.mxu0
    %v409 = vadd.f32 0.0, %v408
    %410 = vmatmul.bf16.gmra.mxu0 %v266
    %v411 = vpop.f32.mrf.mxu0
    %v412 = vadd.f32 0.0, %v411
    %v413 = vpop.f32.mrf.mxu0
    %v414 = vadd.f32 0.0, %v413
    %415 = vmatmul.bf16.gmra.mxu0 %v267
    %v416 = vpop.f32.mrf.mxu0
    %v417 = vadd.f32 0.0, %v416
    %v418 = vpop.f32.mrf.mxu0
    %v419 = vadd.f32 0.0, %v418
    %420 = vdwg.mxu0
    %v421 = vpack.c.bf16 %v344, %v342
    %v422 = vpack.c.bf16 %v349, %v347
    %v423 = vpack.c.bf16 %v354, %v352
    %v424 = vpack.c.bf16 %v359, %v357
    %v425 = vpack.c.bf16 %v364, %v362
    %v426 = vpack.c.bf16 %v369, %v367
    %v427 = vpack.c.bf16 %v374, %v372
    %v428 = vpack.c.bf16 %v379, %v377
    %v429 = vpack.c.bf16 %v384, %v382
    %v430 = vpack.c.bf16 %v389, %v387
    %v431 = vpack.c.bf16 %v394, %v392
    %v432 = vpack.c.bf16 %v399, %v397
    %v433 = vpack.c.bf16 %v404, %v402
    %v434 = vpack.c.bf16 %v409, %v407
    %v435 = vpack.c.bf16 %v414, %v412
    %v436 = vpack.c.bf16 %v419, %v417
    %v437 = vld [vmem:[%s3] sm:$0x1]
    %v439 = vperm.slane %v437, 0
    %v473 = vunpack.c.l.b16 %v108
    %v474 = vunpack.c.h.b16 %v108
    %v475 = vunpack.c.l.b16 %v109
    %v476 = vunpack.c.h.b16 %v109
    %v477 = vunpack.c.l.b16 %v110
    %v478 = vunpack.c.h.b16 %v110
    %v479 = vunpack.c.l.b16 %v111
    %v480 = vunpack.c.h.b16 %v111
    %v481 = vunpack.c.l.b16 %v112
    %v482 = vunpack.c.h.b16 %v112
    %v483 = vunpack.c.l.b16 %v113
    %v484 = vunpack.c.h.b16 %v113
    %v485 = vunpack.c.l.b16 %v114
    %v486 = vunpack.c.h.b16 %v114
    %v487 = vunpack.c.l.b16 %v115
    %v488 = vunpack.c.h.b16 %v115
    %v489 = vunpack.c.l.b16 %v116
    %v490 = vunpack.c.h.b16 %v116
    %v491 = vunpack.c.l.b16 %v117
    %v492 = vunpack.c.h.b16 %v117
    %v493 = vunpack.c.l.b16 %v118
    %v494 = vunpack.c.h.b16 %v118
    %v495 = vunpack.c.l.b16 %v119
    %v496 = vunpack.c.h.b16 %v119
    %v497 = vunpack.c.l.b16 %v120
    %v498 = vunpack.c.h.b16 %v120
    %v499 = vunpack.c.l.b16 %v121
    %v500 = vunpack.c.h.b16 %v121
    %v501 = vunpack.c.l.b16 %v122
    %v502 = vunpack.c.h.b16 %v122
    %v503 = vunpack.c.l.b16 %v123
    %v504 = vunpack.c.h.b16 %v123
    %v505 = vunpack.c.l.b16 %v124
    %v506 = vunpack.c.h.b16 %v124
    %v507 = vunpack.c.l.b16 %v125
    %v508 = vunpack.c.h.b16 %v125
    %v509 = vunpack.c.l.b16 %v126
    %v510 = vunpack.c.h.b16 %v126
    %v511 = vunpack.c.l.b16 %v127
    %v512 = vunpack.c.h.b16 %v127
    %v513 = vunpack.c.l.b16 %v128
    %v514 = vunpack.c.h.b16 %v128
    %v515 = vunpack.c.l.b16 %v129
    %v516 = vunpack.c.h.b16 %v129
    %v517 = vunpack.c.l.b16 %v130
    %v518 = vunpack.c.h.b16 %v130
    %v519 = vunpack.c.l.b16 %v131
    %v520 = vunpack.c.h.b16 %v131
    %v521 = vunpack.c.l.b16 %v132
    %v522 = vunpack.c.h.b16 %v132
    %v523 = vunpack.c.l.b16 %v133
    %v524 = vunpack.c.h.b16 %v133
    %v525 = vunpack.c.l.b16 %v134
    %v526 = vunpack.c.h.b16 %v134
    %v527 = vunpack.c.l.b16 %v135
    %v528 = vunpack.c.h.b16 %v135
    %v529 = vunpack.c.l.b16 %v136
    %v530 = vunpack.c.h.b16 %v136
    %v531 = vunpack.c.l.b16 %v137
    %v532 = vunpack.c.h.b16 %v137
    %v533 = vunpack.c.l.b16 %v138
    %v534 = vunpack.c.h.b16 %v138
    %v535 = vunpack.c.l.b16 %v139
    %v536 = vunpack.c.h.b16 %v139
    %v537 = vpack.c.b16 %v475, %v473
    %v538 = vpack.c.b16 %v476, %v474
    %v539 = vpack.c.b16 %v479, %v477
    %v540 = vpack.c.b16 %v480, %v478
    %v541 = vpack.c.b16 %v483, %v481
    %v542 = vpack.c.b16 %v484, %v482
    %v543 = vpack.c.b16 %v487, %v485
    %v544 = vpack.c.b16 %v488, %v486
    %v545 = vpack.c.b16 %v491, %v489
    %v546 = vpack.c.b16 %v492, %v490
    %v547 = vpack.c.b16 %v495, %v493
    %v548 = vpack.c.b16 %v496, %v494
    %v549 = vpack.c.b16 %v499, %v497
    %v550 = vpack.c.b16 %v500, %v498
    %v551 = vpack.c.b16 %v503, %v501
    %v552 = vpack.c.b16 %v504, %v502
    %v553 = vpack.c.b16 %v507, %v505
    %v554 = vpack.c.b16 %v508, %v506
    %v555 = vpack.c.b16 %v511, %v509
    %v556 = vpack.c.b16 %v512, %v510
    %v557 = vpack.c.b16 %v515, %v513
    %v558 = vpack.c.b16 %v516, %v514
    %v559 = vpack.c.b16 %v519, %v517
    %v560 = vpack.c.b16 %v520, %v518
    %v561 = vpack.c.b16 %v523, %v521
    %v562 = vpack.c.b16 %v524, %v522
    %v563 = vpack.c.b16 %v527, %v525
    %v564 = vpack.c.b16 %v528, %v526
    %v565 = vpack.c.b16 %v531, %v529
    %v566 = vpack.c.b16 %v532, %v530
    %v567 = vpack.c.b16 %v535, %v533
    %v568 = vpack.c.b16 %v536, %v534
    %601 = vmatpush.bf16.msra.mxu0 %v428
    %602 = vmatpush.bf16.msra.mxu0 %v427
    %603 = vmatpush.bf16.msra.mxu0 %v426
    %604 = vmatpush.bf16.msra.mxu0 %v425
    %605 = vmatpush.bf16.msra.mxu0 %v424
    %606 = vmatpush.bf16.msra.mxu0 %v423
    %607 = vmatpush.bf16.msra.mxu0 %v422
    %608 = vmatpush.bf16.msra.mxu0 %v421
    %609 = vmatmul.bf16.gmra.mxu0 %v537
    %v610 = vpop.f32.mrf.mxu0
    %v611 = vadd.f32 %v439, %v610
    %v612 = vpop.f32.mrf.mxu0
    %v613 = vadd.f32 %v439, %v612
    %614 = vmatmul.bf16.gmra.mxu0 %v539
    %v615 = vpop.f32.mrf.mxu0
    %v616 = vadd.f32 %v439, %v615
    %v617 = vpop.f32.mrf.mxu0
    %v618 = vadd.f32 %v439, %v617
    %619 = vmatmul.bf16.gmra.mxu0 %v541
    %v620 = vpop.f32.mrf.mxu0
    %v621 = vadd.f32 %v439, %v620
    %v622 = vpop.f32.mrf.mxu0
    %v623 = vadd.f32 %v439, %v622
    %624 = vmatmul.bf16.gmra.mxu0 %v543
    %v625 = vpop.f32.mrf.mxu0
    %v626 = vadd.f32 %v439, %v625
    %v627 = vpop.f32.mrf.mxu0
    %v628 = vadd.f32 %v439, %v627
    %629 = vmatmul.bf16.gmra.mxu0 %v545
    %v630 = vpop.f32.mrf.mxu0
    %v631 = vadd.f32 %v439, %v630
    %v632 = vpop.f32.mrf.mxu0
    %v633 = vadd.f32 %v439, %v632
    %634 = vmatmul.bf16.gmra.mxu0 %v547
    %v635 = vpop.f32.mrf.mxu0
    %v636 = vadd.f32 %v439, %v635
    %v637 = vpop.f32.mrf.mxu0
    %v638 = vadd.f32 %v439, %v637
    %639 = vmatmul.bf16.gmra.mxu0 %v549
    %v640 = vpop.f32.mrf.mxu0
    %v641 = vadd.f32 %v439, %v640
    %v642 = vpop.f32.mrf.mxu0
    %v643 = vadd.f32 %v439, %v642
    %644 = vmatmul.bf16.gmra.mxu0 %v551
    %v645 = vpop.f32.mrf.mxu0
    %v646 = vadd.f32 %v439, %v645
    %v647 = vpop.f32.mrf.mxu0
    %v648 = vadd.f32 %v439, %v647
    %649 = vmatmul.bf16.gmra.mxu0 %v553
    %v650 = vpop.f32.mrf.mxu0
    %v651 = vadd.f32 %v439, %v650
    %v652 = vpop.f32.mrf.mxu0
    %v653 = vadd.f32 %v439, %v652
    %654 = vmatmul.bf16.gmra.mxu0 %v555
    %v655 = vpop.f32.mrf.mxu0
    %v656 = vadd.f32 %v439, %v655
    %v657 = vpop.f32.mrf.mxu0
    %v658 = vadd.f32 %v439, %v657
    %659 = vmatmul.bf16.gmra.mxu0 %v557
    %v660 = vpop.f32.mrf.mxu0
    %v661 = vadd.f32 %v439, %v660
    %v662 = vpop.f32.mrf.mxu0
    %v663 = vadd.f32 %v439, %v662
    %664 = vmatmul.bf16.gmra.mxu0 %v559
    %v665 = vpop.f32.mrf.mxu0
    %v666 = vadd.f32 %v439, %v665
    %v667 = vpop.f32.mrf.mxu0
    %v668 = vadd.f32 %v439, %v667
    %669 = vmatmul.bf16.gmra.mxu0 %v561
    %v670 = vpop.f32.mrf.mxu0
    %v671 = vadd.f32 %v439, %v670
    %v672 = vpop.f32.mrf.mxu0
    %v673 = vadd.f32 %v439, %v672
    %674 = vmatmul.bf16.gmra.mxu0 %v563
    %v675 = vpop.f32.mrf.mxu0
    %v676 = vadd.f32 %v439, %v675
    %v677 = vpop.f32.mrf.mxu0
    %v678 = vadd.f32 %v439, %v677
    %679 = vmatmul.bf16.gmra.mxu0 %v565
    %v680 = vpop.f32.mrf.mxu0
    %v681 = vadd.f32 %v439, %v680
    %v682 = vpop.f32.mrf.mxu0
    %v683 = vadd.f32 %v439, %v682
    %684 = vmatmul.bf16.gmra.mxu0 %v567
    %v685 = vpop.f32.mrf.mxu0
    %v686 = vadd.f32 %v439, %v685
    %v687 = vpop.f32.mrf.mxu0
    %v688 = vadd.f32 %v439, %v687
    %689 = vdwg.mxu0
    %690 = vmatpush.bf16.msra.mxu0 %v436
    %691 = vmatpush.bf16.msra.mxu0 %v435
    %692 = vmatpush.bf16.msra.mxu0 %v434
    %693 = vmatpush.bf16.msra.mxu0 %v433
    %694 = vmatpush.bf16.msra.mxu0 %v432
    %695 = vmatpush.bf16.msra.mxu0 %v431
    %696 = vmatpush.bf16.msra.mxu0 %v430
    %697 = vmatpush.bf16.msra.mxu0 %v429
    %698 = vmatmul.bf16.gmra.mxu0 %v538
    %v699 = vpop.f32.mrf.mxu0
    %v700 = vadd.f32 %v611, %v699
    %v701 = vpop.f32.mrf.mxu0
    %v702 = vadd.f32 %v613, %v701
    %703 = vmatmul.bf16.gmra.mxu0 %v540
    %v704 = vpop.f32.mrf.mxu0
    %v705 = vadd.f32 %v616, %v704
    %v706 = vpop.f32.mrf.mxu0
    %v707 = vadd.f32 %v618, %v706
    %708 = vmatmul.bf16.gmra.mxu0 %v542
    %v709 = vpop.f32.mrf.mxu0
    %v710 = vadd.f32 %v621, %v709
    %v711 = vpop.f32.mrf.mxu0
    %v712 = vadd.f32 %v623, %v711
    %713 = vmatmul.bf16.gmra.mxu0 %v544
    %v714 = vpop.f32.mrf.mxu0
    %v715 = vadd.f32 %v626, %v714
    %v716 = vpop.f32.mrf.mxu0
    %v717 = vadd.f32 %v628, %v716
    %718 = vmatmul.bf16.gmra.mxu0 %v546
    %v719 = vpop.f32.mrf.mxu0
    %v720 = vadd.f32 %v631, %v719
    %v721 = vpop.f32.mrf.mxu0
    %v722 = vadd.f32 %v633, %v721
    %723 = vmatmul.bf16.gmra.mxu0 %v548
    %v724 = vpop.f32.mrf.mxu0
    %v725 = vadd.f32 %v636, %v724
    %v726 = vpop.f32.mrf.mxu0
    %v727 = vadd.f32 %v638, %v726
    %728 = vmatmul.bf16.gmra.mxu0 %v550
    %v729 = vpop.f32.mrf.mxu0
    %v730 = vadd.f32 %v641, %v729
    %v731 = vpop.f32.mrf.mxu0
    %v732 = vadd.f32 %v643, %v731
    %733 = vmatmul.bf16.gmra.mxu0 %v552
    %v734 = vpop.f32.mrf.mxu0
    %v735 = vadd.f32 %v646, %v734
    %v736 = vpop.f32.mrf.mxu0
    %v737 = vadd.f32 %v648, %v736
    %738 = vmatmul.bf16.gmra.mxu0 %v554
    %v739 = vpop.f32.mrf.mxu0
    %v740 = vadd.f32 %v651, %v739
    %v741 = vpop.f32.mrf.mxu0
    %v742 = vadd.f32 %v653, %v741
    %743 = vmatmul.bf16.gmra.mxu0 %v556
    %v744 = vpop.f32.mrf.mxu0
    %v745 = vadd.f32 %v656, %v744
    %v746 = vpop.f32.mrf.mxu0
    %v747 = vadd.f32 %v658, %v746
    %748 = vmatmul.bf16.gmra.mxu0 %v558
    %v749 = vpop.f32.mrf.mxu0
    %v750 = vadd.f32 %v661, %v749
    %v751 = vpop.f32.mrf.mxu0
    %v752 = vadd.f32 %v663, %v751
    %753 = vmatmul.bf16.gmra.mxu0 %v560
    %v754 = vpop.f32.mrf.mxu0
    %v755 = vadd.f32 %v666, %v754
    %v756 = vpop.f32.mrf.mxu0
    %v757 = vadd.f32 %v668, %v756
    %758 = vmatmul.bf16.gmra.mxu0 %v562
    %v759 = vpop.f32.mrf.mxu0
    %v760 = vadd.f32 %v671, %v759
    %v761 = vpop.f32.mrf.mxu0
    %v762 = vadd.f32 %v673, %v761
    %763 = vmatmul.bf16.gmra.mxu0 %v564
    %v764 = vpop.f32.mrf.mxu0
    %v765 = vadd.f32 %v676, %v764
    %v766 = vpop.f32.mrf.mxu0
    %v767 = vadd.f32 %v678, %v766
    %768 = vmatmul.bf16.gmra.mxu0 %v566
    %v769 = vpop.f32.mrf.mxu0
    %v770 = vadd.f32 %v681, %v769
    %v771 = vpop.f32.mrf.mxu0
    %v772 = vadd.f32 %v683, %v771
    %773 = vmatmul.bf16.gmra.mxu0 %v568
    %v774 = vpop.f32.mrf.mxu0
    %v775 = vadd.f32 %v686, %v774
    %v776 = vpop.f32.mrf.mxu0
    %v777 = vadd.f32 %v688, %v776
    %778 = vdwg.mxu0
    %v779 = vmax.f32 %v700, 0.0
    %v780 = vmax.f32 %v702, 0.0
    %v781 = vmax.f32 %v705, 0.0
    %v782 = vmax.f32 %v707, 0.0
    %v783 = vmax.f32 %v710, 0.0
    %v784 = vmax.f32 %v712, 0.0
    %v785 = vmax.f32 %v715, 0.0
    %v786 = vmax.f32 %v717, 0.0
    %v787 = vmax.f32 %v720, 0.0
    %v788 = vmax.f32 %v722, 0.0
    %v789 = vmax.f32 %v725, 0.0
    %v790 = vmax.f32 %v727, 0.0
    %v791 = vmax.f32 %v730, 0.0
    %v792 = vmax.f32 %v732, 0.0
    %v793 = vmax.f32 %v735, 0.0
    %v794 = vmax.f32 %v737, 0.0
    %v795 = vmax.f32 %v740, 0.0
    %v796 = vmax.f32 %v742, 0.0
    %v797 = vmax.f32 %v745, 0.0
    %v798 = vmax.f32 %v747, 0.0
    %v799 = vmax.f32 %v750, 0.0
    %v800 = vmax.f32 %v752, 0.0
    %v801 = vmax.f32 %v755, 0.0
    %v802 = vmax.f32 %v757, 0.0
    %v803 = vmax.f32 %v760, 0.0
    %v804 = vmax.f32 %v762, 0.0
    %v805 = vmax.f32 %v765, 0.0
    %v806 = vmax.f32 %v767, 0.0
    %v807 = vmax.f32 %v770, 0.0
    %v808 = vmax.f32 %v772, 0.0
    %v809 = vmax.f32 %v775, 0.0
    %v810 = vmax.f32 %v777, 0.0
    %v811 = vpack.c.bf16 %v780, %v779
    %v812 = vpack.c.bf16 %v782, %v781
    %v813 = vpack.c.bf16 %v784, %v783
    %v814 = vpack.c.bf16 %v786, %v785
    %v815 = vpack.c.bf16 %v788, %v787
    %v816 = vpack.c.bf16 %v790, %v789
    %v817 = vpack.c.bf16 %v792, %v791
    %v818 = vpack.c.bf16 %v794, %v793
    %v819 = vpack.c.bf16 %v796, %v795
    %v820 = vpack.c.bf16 %v798, %v797
    %v821 = vpack.c.bf16 %v800, %v799
    %v822 = vpack.c.bf16 %v802, %v801
    %v823 = vpack.c.bf16 %v804, %v803
    %v824 = vpack.c.bf16 %v806, %v805
    %v825 = vpack.c.bf16 %v808, %v807
    %v826 = vpack.c.bf16 %v810, %v809
    %v827 = vld [vmem:[#allocation8] sm:$0xff]
    %v828 = vld [vmem:[#allocation8 + $0x8] sm:$0xff]
    %v829 = vld [vmem:[#allocation8 + $0x10] sm:$0xff]
    %v830 = vld [vmem:[#allocation8 + $0x18] sm:$0xff]
    %v831 = vld [vmem:[#allocation8 + $0x20] sm:$0xff]
    %v832 = vld [vmem:[#allocation8 + $0x28] sm:$0xff]
    %v833 = vld [vmem:[#allocation8 + $0x30] sm:$0xff]
    %v834 = vld [vmem:[#allocation8 + $0x38] sm:$0xff]
    %v835 = vld [vmem:[#allocation8 + $0x40] sm:$0xff]
    %v836 = vld [vmem:[#allocation8 + $0x48] sm:$0xff]
    %v837 = vld [vmem:[#allocation8 + $0x50] sm:$0xff]
    %v838 = vld [vmem:[#allocation8 + $0x58] sm:$0xff]
    %v839 = vld [vmem:[#allocation8 + $0x60] sm:$0xff]
    %v840 = vld [vmem:[#allocation8 + $0x68] sm:$0xff]
    %v841 = vld [vmem:[#allocation8 + $0x70] sm:$0xff]
    %v842 = vld [vmem:[#allocation8 + $0x78] sm:$0xff]
    %v859 = vunpack.c.l.b16 %v827
    %v860 = vunpack.c.h.b16 %v827
    %v861 = vunpack.c.l.b16 %v828
    %v862 = vunpack.c.h.b16 %v828
    %v863 = vunpack.c.l.b16 %v829
    %v864 = vunpack.c.h.b16 %v829
    %v865 = vunpack.c.l.b16 %v830
    %v866 = vunpack.c.h.b16 %v830
    %v867 = vunpack.c.l.b16 %v831
    %v868 = vunpack.c.h.b16 %v831
    %v869 = vunpack.c.l.b16 %v832
    %v870 = vunpack.c.h.b16 %v832
    %v871 = vunpack.c.l.b16 %v833
    %v872 = vunpack.c.h.b16 %v833
    %v873 = vunpack.c.l.b16 %v834
    %v874 = vunpack.c.h.b16 %v834
    %v875 = vunpack.c.l.b16 %v835
    %v876 = vunpack.c.h.b16 %v835
    %v877 = vunpack.c.l.b16 %v836
    %v878 = vunpack.c.h.b16 %v836
    %v879 = vunpack.c.l.b16 %v837
    %v880 = vunpack.c.h.b16 %v837
    %v881 = vunpack.c.l.b16 %v838
    %v882 = vunpack.c.h.b16 %v838
    %v883 = vunpack.c.l.b16 %v839
    %v884 = vunpack.c.h.b16 %v839
    %v885 = vunpack.c.l.b16 %v840
    %v886 = vunpack.c.h.b16 %v840
    %v887 = vunpack.c.l.b16 %v841
    %v888 = vunpack.c.h.b16 %v841
    %v889 = vunpack.c.l.b16 %v842
    %v890 = vunpack.c.h.b16 %v842
    %v891 = vpack.c.b16 %v861, %v859
    %v892 = vpack.c.b16 %v862, %v860
    %v893 = vpack.c.b16 %v865, %v863
    %v894 = vpack.c.b16 %v866, %v864
    %v895 = vpack.c.b16 %v869, %v867
    %v896 = vpack.c.b16 %v870, %v868
    %v897 = vpack.c.b16 %v873, %v871
    %v898 = vpack.c.b16 %v874, %v872
    %v899 = vpack.c.b16 %v877, %v875
    %v900 = vpack.c.b16 %v878, %v876
    %v901 = vpack.c.b16 %v881, %v879
    %v902 = vpack.c.b16 %v882, %v880
    %v903 = vpack.c.b16 %v885, %v883
    %v904 = vpack.c.b16 %v886, %v884
    %v905 = vpack.c.b16 %v889, %v887
    %v906 = vpack.c.b16 %v890, %v888
    %923 = vmatpush.bf16.msra.mxu0 %v905
    %924 = vmatpush.bf16.msra.mxu0 %v903
    %925 = vmatpush.bf16.msra.mxu0 %v901
    %926 = vmatpush.bf16.msra.mxu0 %v899
    %927 = vmatpush.bf16.msra.mxu0 %v897
    %928 = vmatpush.bf16.msra.mxu0 %v895
    %929 = vmatpush.bf16.msra.mxu0 %v893
    %930 = vmatpush.bf16.msra.mxu0 %v891
    %931 = vmatmul.bf16.gmra.mxu0 %v811
    %v932 = vpop.f32.mrf.mxu0
    %v933 = vadd.f32 0.0, %v932
    %v934 = vpop.f32.mrf.mxu0
    %v935 = vadd.f32 0.0, %v934
    %936 = vmatmul.bf16.gmra.mxu0 %v812
    %v937 = vpop.f32.mrf.mxu0
    %v938 = vadd.f32 0.0, %v937
    %v939 = vpop.f32.mrf.mxu0
    %v940 = vadd.f32 0.0, %v939
    %941 = vmatmul.bf16.gmra.mxu0 %v813
    %v942 = vpop.f32.mrf.mxu0
    %v943 = vadd.f32 0.0, %v942
    %v944 = vpop.f32.mrf.mxu0
    %v945 = vadd.f32 0.0, %v944
    %946 = vmatmul.bf16.gmra.mxu0 %v814
    %v947 = vpop.f32.mrf.mxu0
    %v948 = vadd.f32 0.0, %v947
    %v949 = vpop.f32.mrf.mxu0
    %v950 = vadd.f32 0.0, %v949
    %951 = vmatmul.bf16.gmra.mxu0 %v815
    %v952 = vpop.f32.mrf.mxu0
    %v953 = vadd.f32 0.0, %v952
    %v954 = vpop.f32.mrf.mxu0
    %v955 = vadd.f32 0.0, %v954
    %956 = vmatmul.bf16.gmra.mxu0 %v816
    %v957 = vpop.f32.mrf.mxu0
    %v958 = vadd.f32 0.0, %v957
    %v959 = vpop.f32.mrf.mxu0
    %v960 = vadd.f32 0.0, %v959
    %961 = vmatmul.bf16.gmra.mxu0 %v817
    %v962 = vpop.f32.mrf.mxu0
    %v963 = vadd.f32 0.0, %v962
    %v964 = vpop.f32.mrf.mxu0
    %v965 = vadd.f32 0.0, %v964
    %966 = vmatmul.bf16.gmra.mxu0 %v818
    %v967 = vpop.f32.mrf.mxu0
    %v968 = vadd.f32 0.0, %v967
    %v969 = vpop.f32.mrf.mxu0
    %v970 = vadd.f32 0.0, %v969
    %971 = vmatmul.bf16.gmra.mxu0 %v819
    %v972 = vpop.f32.mrf.mxu0
    %v973 = vadd.f32 0.0, %v972
    %v974 = vpop.f32.mrf.mxu0
    %v975 = vadd.f32 0.0, %v974
    %976 = vmatmul.bf16.gmra.mxu0 %v820
    %v977 = vpop.f32.mrf.mxu0
    %v978 = vadd.f32 0.0, %v977
    %v979 = vpop.f32.mrf.mxu0
    %v980 = vadd.f32 0.0, %v979
    %981 = vmatmul.bf16.gmra.mxu0 %v821
    %v982 = vpop.f32.mrf.mxu0
    %v983 = vadd.f32 0.0, %v982
    %v984 = vpop.f32.mrf.mxu0
    %v985 = vadd.f32 0.0, %v984
    %986 = vmatmul.bf16.gmra.mxu0 %v822
    %v987 = vpop.f32.mrf.mxu0
    %v988 = vadd.f32 0.0, %v987
    %v989 = vpop.f32.mrf.mxu0
    %v990 = vadd.f32 0.0, %v989
    %991 = vmatmul.bf16.gmra.mxu0 %v823
    %v992 = vpop.f32.mrf.mxu0
    %v993 = vadd.f32 0.0, %v992
    %v994 = vpop.f32.mrf.mxu0
    %v995 = vadd.f32 0.0, %v994
    %996 = vmatmul.bf16.gmra.mxu0 %v824
    %v997 = vpop.f32.mrf.mxu0
    %v998 = vadd.f32 0.0, %v997
    %v999 = vpop.f32.mrf.mxu0
    %v1000 = vadd.f32 0.0, %v999
    %1001 = vmatmul.bf16.gmra.mxu0 %v825
    %v1002 = vpop.f32.mrf.mxu0
    %v1003 = vadd.f32 0.0, %v1002
    %v1004 = vpop.f32.mrf.mxu0
    %v1005 = vadd.f32 0.0, %v1004
    %1006 = vmatmul.bf16.gmra.mxu0 %v826
    %v1007 = vpop.f32.mrf.mxu0
    %v1008 = vadd.f32 0.0, %v1007
    %v1009 = vpop.f32.mrf.mxu0
    %v1010 = vadd.f32 0.0, %v1009
    %1011 = vdwg.mxu0
    %1012 = vmatpush.bf16.msra.mxu0 %v906
    %1013 = vmatpush.bf16.msra.mxu0 %v904
    %1014 = vmatpush.bf16.msra.mxu0 %v902
    %1015 = vmatpush.bf16.msra.mxu0 %v900
    %1016 = vmatpush.bf16.msra.mxu0 %v898
    %1017 = vmatpush.bf16.msra.mxu0 %v896
    %1018 = vmatpush.bf16.msra.mxu0 %v894
    %1019 = vmatpush.bf16.msra.mxu0 %v892
    %1020 = vmatmul.bf16.gmra.mxu0 %v811
    %v1021 = vpop.f32.mrf.mxu0
    %v1022 = vadd.f32 0.0, %v1021
    %v1023 = vpop.f32.mrf.mxu0
    %v1024 = vadd.f32 0.0, %v1023
    %1025 = vmatmul.bf16.gmra.mxu0 %v812
    %v1026 = vpop.f32.mrf.mxu0
    %v1027 = vadd.f32 0.0, %v1026
    %v1028 = vpop.f32.mrf.mxu0
    %v1029 = vadd.f32 0.0, %v1028
    %1030 = vmatmul.bf16.gmra.mxu0 %v813
    %v1031 = vpop.f32.mrf.mxu0
    %v1032 = vadd.f32 0.0, %v1031
    %v1033 = vpop.f32.mrf.mxu0
    %v1034 = vadd.f32 0.0, %v1033
    %1035 = vmatmul.bf16.gmra.mxu0 %v814
    %v1036 = vpop.f32.mrf.mxu0
    %v1037 = vadd.f32 0.0, %v1036
    %v1038 = vpop.f32.mrf.mxu0
    %v1039 = vadd.f32 0.0, %v1038
    %1040 = vmatmul.bf16.gmra.mxu0 %v815
    %v1041 = vpop.f32.mrf.mxu0
    %v1042 = vadd.f32 0.0, %v1041
    %v1043 = vpop.f32.mrf.mxu0
    %v1044 = vadd.f32 0.0, %v1043
    %1045 = vmatmul.bf16.gmra.mxu0 %v816
    %v1046 = vpop.f32.mrf.mxu0
    %v1047 = vadd.f32 0.0, %v1046
    %v1048 = vpop.f32.mrf.mxu0
    %v1049 = vadd.f32 0.0, %v1048
    %1050 = vmatmul.bf16.gmra.mxu0 %v817
    %v1051 = vpop.f32.mrf.mxu0
    %v1052 = vadd.f32 0.0, %v1051
    %v1053 = vpop.f32.mrf.mxu0
    %v1054 = vadd.f32 0.0, %v1053
    %1055 = vmatmul.bf16.gmra.mxu0 %v818
    %v1056 = vpop.f32.mrf.mxu0
    %v1057 = vadd.f32 0.0, %v1056
    %v1058 = vpop.f32.mrf.mxu0
    %v1059 = vadd.f32 0.0, %v1058
    %1060 = vmatmul.bf16.gmra.mxu0 %v819
    %v1061 = vpop.f32.mrf.mxu0
    %v1062 = vadd.f32 0.0, %v1061
    %v1063 = vpop.f32.mrf.mxu0
    %v1064 = vadd.f32 0.0, %v1063
    %1065 = vmatmul.bf16.gmra.mxu0 %v820
    %v1066 = vpop.f32.mrf.mxu0
    %v1067 = vadd.f32 0.0, %v1066
    %v1068 = vpop.f32.mrf.mxu0
    %v1069 = vadd.f32 0.0, %v1068
    %1070 = vmatmul.bf16.gmra.mxu0 %v821
    %v1071 = vpop.f32.mrf.mxu0
    %v1072 = vadd.f32 0.0, %v1071
    %v1073 = vpop.f32.mrf.mxu0
    %v1074 = vadd.f32 0.0, %v1073
    %1075 = vmatmul.bf16.gmra.mxu0 %v822
    %v1076 = vpop.f32.mrf.mxu0
    %v1077 = vadd.f32 0.0, %v1076
    %v1078 = vpop.f32.mrf.mxu0
    %v1079 = vadd.f32 0.0, %v1078
    %1080 = vmatmul.bf16.gmra.mxu0 %v823
    %v1081 = vpop.f32.mrf.mxu0
    %v1082 = vadd.f32 0.0, %v1081
    %v1083 = vpop.f32.mrf.mxu0
    %v1084 = vadd.f32 0.0, %v1083
    %1085 = vmatmul.bf16.gmra.mxu0 %v824
    %v1086 = vpop.f32.mrf.mxu0
    %v1087 = vadd.f32 0.0, %v1086
    %v1088 = vpop.f32.mrf.mxu0
    %v1089 = vadd.f32 0.0, %v1088
    %1090 = vmatmul.bf16.gmra.mxu0 %v825
    %v1091 = vpop.f32.mrf.mxu0
    %v1092 = vadd.f32 0.0, %v1091
    %v1093 = vpop.f32.mrf.mxu0
    %v1094 = vadd.f32 0.0, %v1093
    %1095 = vmatmul.bf16.gmra.mxu0 %v826
    %v1096 = vpop.f32.mrf.mxu0
    %v1097 = vadd.f32 0.0, %v1096
    %v1098 = vpop.f32.mrf.mxu0
    %v1099 = vadd.f32 0.0, %v1098
    %1100 = vdwg.mxu0
    %v1101 = vpack.c.bf16 %v935, %v933
    %v1102 = vpack.c.bf16 %v1024, %v1022
    %v1103 = vpack.c.bf16 %v940, %v938
    %v1104 = vpack.c.bf16 %v1029, %v1027
    %v1105 = vpack.c.bf16 %v945, %v943
    %v1106 = vpack.c.bf16 %v1034, %v1032
    %v1107 = vpack.c.bf16 %v950, %v948
    %v1108 = vpack.c.bf16 %v1039, %v1037
    %v1109 = vpack.c.bf16 %v955, %v953
    %v1110 = vpack.c.bf16 %v1044, %v1042
    %v1111 = vpack.c.bf16 %v960, %v958
    %v1112 = vpack.c.bf16 %v1049, %v1047
    %v1113 = vpack.c.bf16 %v965, %v963
    %v1114 = vpack.c.bf16 %v1054, %v1052
    %v1115 = vpack.c.bf16 %v970, %v968
    %v1116 = vpack.c.bf16 %v1059, %v1057
    %v1117 = vpack.c.bf16 %v975, %v973
    %v1118 = vpack.c.bf16 %v1064, %v1062
    %v1119 = vpack.c.bf16 %v980, %v978
    %v1120 = vpack.c.bf16 %v1069, %v1067
    %v1121 = vpack.c.bf16 %v985, %v983
    %v1122 = vpack.c.bf16 %v1074, %v1072
    %v1123 = vpack.c.bf16 %v990, %v988
    %v1124 = vpack.c.bf16 %v1079, %v1077
    %v1125 = vpack.c.bf16 %v995, %v993
    %v1126 = vpack.c.bf16 %v1084, %v1082
    %v1127 = vpack.c.bf16 %v1000, %v998
    %v1128 = vpack.c.bf16 %v1089, %v1087
    %v1129 = vpack.c.bf16 %v1005, %v1003
    %v1130 = vpack.c.bf16 %v1094, %v1092
    %v1131 = vpack.c.bf16 %v1010, %v1008
    %v1132 = vpack.c.bf16 %v1099, %v1097
    %v1133 = vld [vmem:[%s5] sm:$0x3]
    %v1135 = vperm.slane %v1133, 0
    %v1136 = vperm.slane %v1133, 1
    %1139 = vmatpush.bf16.msra.mxu0 %v1115
    %1140 = vmatpush.bf16.msra.mxu0 %v1113
    %1141 = vmatpush.bf16.msra.mxu0 %v1111
    %1142 = vmatpush.bf16.msra.mxu0 %v1109
    %1143 = vmatpush.bf16.msra.mxu0 %v1107
    %1144 = vmatpush.bf16.msra.mxu0 %v1105
    %1145 = vmatpush.bf16.msra.mxu0 %v1103
    %1146 = vmatpush.bf16.msra.mxu0 %v1101
    %1147 = vmatmul.bf16.gmra.mxu0 %v537
    %v1148 = vpop.f32.mrf.mxu0
    %v1149 = vadd.f32 %v1135, %v1148
    %v1150 = vpop.f32.mrf.mxu0
    %v1151 = vadd.f32 %v1135, %v1150
    %1152 = vmatmul.bf16.gmra.mxu0 %v539
    %v1153 = vpop.f32.mrf.mxu0
    %v1154 = vadd.f32 %v1135, %v1153
    %v1155 = vpop.f32.mrf.mxu0
    %v1156 = vadd.f32 %v1135, %v1155
    %1157 = vmatmul.bf16.gmra.mxu0 %v541
    %v1158 = vpop.f32.mrf.mxu0
    %v1159 = vadd.f32 %v1135, %v1158
    %v1160 = vpop.f32.mrf.mxu0
    %v1161 = vadd.f32 %v1135, %v1160
    %1162 = vmatmul.bf16.gmra.mxu0 %v543
    %v1163 = vpop.f32.mrf.mxu0
    %v1164 = vadd.f32 %v1135, %v1163
    %v1165 = vpop.f32.mrf.mxu0
    %v1166 = vadd.f32 %v1135, %v1165
    %1167 = vmatmul.bf16.gmra.mxu0 %v545
    %v1168 = vpop.f32.mrf.mxu0
    %v1169 = vadd.f32 %v1135, %v1168
    %v1170 = vpop.f32.mrf.mxu0
    %v1171 = vadd.f32 %v1135, %v1170
    %1172 = vmatmul.bf16.gmra.mxu0 %v547
    %v1173 = vpop.f32.mrf.mxu0
    %v1174 = vadd.f32 %v1135, %v1173
    %v1175 = vpop.f32.mrf.mxu0
    %v1176 = vadd.f32 %v1135, %v1175
    %1177 = vmatmul.bf16.gmra.mxu0 %v549
    %v1178 = vpop.f32.mrf.mxu0
    %v1179 = vadd.f32 %v1135, %v1178
    %v1180 = vpop.f32.mrf.mxu0
    %v1181 = vadd.f32 %v1135, %v1180
    %1182 = vmatmul.bf16.gmra.mxu0 %v551
    %v1183 = vpop.f32.mrf.mxu0
    %v1184 = vadd.f32 %v1135, %v1183
    %v1185 = vpop.f32.mrf.mxu0
    %v1186 = vadd.f32 %v1135, %v1185
    %1187 = vmatmul.bf16.gmra.mxu0 %v553
    %v1188 = vpop.f32.mrf.mxu0
    %v1189 = vadd.f32 %v1135, %v1188
    %v1190 = vpop.f32.mrf.mxu0
    %v1191 = vadd.f32 %v1135, %v1190
    %1192 = vmatmul.bf16.gmra.mxu0 %v555
    %v1193 = vpop.f32.mrf.mxu0
    %v1194 = vadd.f32 %v1135, %v1193
    %v1195 = vpop.f32.mrf.mxu0
    %v1196 = vadd.f32 %v1135, %v1195
    %1197 = vmatmul.bf16.gmra.mxu0 %v557
    %v1198 = vpop.f32.mrf.mxu0
    %v1199 = vadd.f32 %v1135, %v1198
    %v1200 = vpop.f32.mrf.mxu0
    %v1201 = vadd.f32 %v1135, %v1200
    %1202 = vmatmul.bf16.gmra.mxu0 %v559
    %v1203 = vpop.f32.mrf.mxu0
    %v1204 = vadd.f32 %v1135, %v1203
    %v1205 = vpop.f32.mrf.mxu0
    %v1206 = vadd.f32 %v1135, %v1205
    %1207 = vmatmul.bf16.gmra.mxu0 %v561
    %v1208 = vpop.f32.mrf.mxu0
    %v1209 = vadd.f32 %v1135, %v1208
    %v1210 = vpop.f32.mrf.mxu0
    %v1211 = vadd.f32 %v1135, %v1210
    %1212 = vmatmul.bf16.gmra.mxu0 %v563
    %v1213 = vpop.f32.mrf.mxu0
    %v1214 = vadd.f32 %v1135, %v1213
    %v1215 = vpop.f32.mrf.mxu0
    %v1216 = vadd.f32 %v1135, %v1215
    %1217 = vmatmul.bf16.gmra.mxu0 %v565
    %v1218 = vpop.f32.mrf.mxu0
    %v1219 = vadd.f32 %v1135, %v1218
    %v1220 = vpop.f32.mrf.mxu0
    %v1221 = vadd.f32 %v1135, %v1220
    %1222 = vmatmul.bf16.gmra.mxu0 %v567
    %v1223 = vpop.f32.mrf.mxu0
    %v1224 = vadd.f32 %v1135, %v1223
    %v1225 = vpop.f32.mrf.mxu0
    %v1226 = vadd.f32 %v1135, %v1225
    %1227 = vdwg.mxu0
    %1228 = vmatpush.bf16.msra.mxu0 %v1131
    %1229 = vmatpush.bf16.msra.mxu0 %v1129
    %1230 = vmatpush.bf16.msra.mxu0 %v1127
    %1231 = vmatpush.bf16.msra.mxu0 %v1125
    %1232 = vmatpush.bf16.msra.mxu0 %v1123
    %1233 = vmatpush.bf16.msra.mxu0 %v1121
    %1234 = vmatpush.bf16.msra.mxu0 %v1119
    %1235 = vmatpush.bf16.msra.mxu0 %v1117
    %1236 = vmatmul.bf16.gmra.mxu0 %v538
    %v1237 = vpop.f32.mrf.mxu0
    %v1238 = vadd.f32 %v1149, %v1237
    %v1239 = vpop.f32.mrf.mxu0
    %v1240 = vadd.f32 %v1151, %v1239
    %1241 = vmatmul.bf16.gmra.mxu0 %v540
    %v1242 = vpop.f32.mrf.mxu0
    %v1243 = vadd.f32 %v1154, %v1242
    %v1244 = vpop.f32.mrf.mxu0
    %v1245 = vadd.f32 %v1156, %v1244
    %1246 = vmatmul.bf16.gmra.mxu0 %v542
    %v1247 = vpop.f32.mrf.mxu0
    %v1248 = vadd.f32 %v1159, %v1247
    %v1249 = vpop.f32.mrf.mxu0
    %v1250 = vadd.f32 %v1161, %v1249
    %1251 = vmatmul.bf16.gmra.mxu0 %v544
    %v1252 = vpop.f32.mrf.mxu0
    %v1253 = vadd.f32 %v1164, %v1252
    %v1254 = vpop.f32.mrf.mxu0
    %v1255 = vadd.f32 %v1166, %v1254
    %1256 = vmatmul.bf16.gmra.mxu0 %v546
    %v1257 = vpop.f32.mrf.mxu0
    %v1258 = vadd.f32 %v1169, %v1257
    %v1259 = vpop.f32.mrf.mxu0
    %v1260 = vadd.f32 %v1171, %v1259
    %1261 = vmatmul.bf16.gmra.mxu0 %v548
    %v1262 = vpop.f32.mrf.mxu0
    %v1263 = vadd.f32 %v1174, %v1262
    %v1264 = vpop.f32.mrf.mxu0
    %v1265 = vadd.f32 %v1176, %v1264
    %1266 = vmatmul.bf16.gmra.mxu0 %v550
    %v1267 = vpop.f32.mrf.mxu0
    %v1268 = vadd.f32 %v1179, %v1267
    %v1269 = vpop.f32.mrf.mxu0
    %v1270 = vadd.f32 %v1181, %v1269
    %1271 = vmatmul.bf16.gmra.mxu0 %v552
    %v1272 = vpop.f32.mrf.mxu0
    %v1273 = vadd.f32 %v1184, %v1272
    %v1274 = vpop.f32.mrf.mxu0
    %v1275 = vadd.f32 %v1186, %v1274
    %1276 = vmatmul.bf16.gmra.mxu0 %v554
    %v1277 = vpop.f32.mrf.mxu0
    %v1278 = vadd.f32 %v1189, %v1277
    %v1279 = vpop.f32.mrf.mxu0
    %v1280 = vadd.f32 %v1191, %v1279
    %1281 = vmatmul.bf16.gmra.mxu0 %v556
    %v1282 = vpop.f32.mrf.mxu0
    %v1283 = vadd.f32 %v1194, %v1282
    %v1284 = vpop.f32.mrf.mxu0
    %v1285 = vadd.f32 %v1196, %v1284
    %1286 = vmatmul.bf16.gmra.mxu0 %v558
    %v1287 = vpop.f32.mrf.mxu0
    %v1288 = vadd.f32 %v1199, %v1287
    %v1289 = vpop.f32.mrf.mxu0
    %v1290 = vadd.f32 %v1201, %v1289
    %1291 = vmatmul.bf16.gmra.mxu0 %v560
    %v1292 = vpop.f32.mrf.mxu0
    %v1293 = vadd.f32 %v1204, %v1292
    %v1294 = vpop.f32.mrf.mxu0
    %v1295 = vadd.f32 %v1206, %v1294
    %1296 = vmatmul.bf16.gmra.mxu0 %v562
    %v1297 = vpop.f32.mrf.mxu0
    %v1298 = vadd.f32 %v1209, %v1297
    %v1299 = vpop.f32.mrf.mxu0
    %v1300 = vadd.f32 %v1211, %v1299
    %1301 = vmatmul.bf16.gmra.mxu0 %v564
    %v1302 = vpop.f32.mrf.mxu0
    %v1303 = vadd.f32 %v1214, %v1302
    %v1304 = vpop.f32.mrf.mxu0
    %v1305 = vadd.f32 %v1216, %v1304
    %1306 = vmatmul.bf16.gmra.mxu0 %v566
    %v1307 = vpop.f32.mrf.mxu0
    %v1308 = vadd.f32 %v1219, %v1307
    %v1309 = vpop.f32.mrf.mxu0
    %v1310 = vadd.f32 %v1221, %v1309
    %1311 = vmatmul.bf16.gmra.mxu0 %v568
    %v1312 = vpop.f32.mrf.mxu0
    %v1313 = vadd.f32 %v1224, %v1312
    %v1314 = vpop.f32.mrf.mxu0
    %v1315 = vadd.f32 %v1226, %v1314
    %1316 = vdwg.mxu0
    %1317 = vmatpush.bf16.msra.mxu0 %v1116
    %1318 = vmatpush.bf16.msra.mxu0 %v1114
    %1319 = vmatpush.bf16.msra.mxu0 %v1112
    %1320 = vmatpush.bf16.msra.mxu0 %v1110
    %1321 = vmatpush.bf16.msra.mxu0 %v1108
    %1322 = vmatpush.bf16.msra.mxu0 %v1106
    %1323 = vmatpush.bf16.msra.mxu0 %v1104
    %1324 = vmatpush.bf16.msra.mxu0 %v1102
    %1325 = vmatmul.bf16.gmra.mxu0 %v537
    %v1326 = vpop.f32.mrf.mxu0
    %v1327 = vadd.f32 %v1136, %v1326
    %v1328 = vpop.f32.mrf.mxu0
    %v1329 = vadd.f32 %v1136, %v1328
    %1330 = vmatmul.bf16.gmra.mxu0 %v539
    %v1331 = vpop.f32.mrf.mxu0
    %v1332 = vadd.f32 %v1136, %v1331
    %v1333 = vpop.f32.mrf.mxu0
    %v1334 = vadd.f32 %v1136, %v1333
    %1335 = vmatmul.bf16.gmra.mxu0 %v541
    %v1336 = vpop.f32.mrf.mxu0
    %v1337 = vadd.f32 %v1136, %v1336
    %v1338 = vpop.f32.mrf.mxu0
    %v1339 = vadd.f32 %v1136, %v1338
    %1340 = vmatmul.bf16.gmra.mxu0 %v543
    %v1341 = vpop.f32.mrf.mxu0
    %v1342 = vadd.f32 %v1136, %v1341
    %v1343 = vpop.f32.mrf.mxu0
    %v1344 = vadd.f32 %v1136, %v1343
    %1345 = vmatmul.bf16.gmra.mxu0 %v545
    %v1346 = vpop.f32.mrf.mxu0
    %v1347 = vadd.f32 %v1136, %v1346
    %v1348 = vpop.f32.mrf.mxu0
    %v1349 = vadd.f32 %v1136, %v1348
    %1350 = vmatmul.bf16.gmra.mxu0 %v547
    %v1351 = vpop.f32.mrf.mxu0
    %v1352 = vadd.f32 %v1136, %v1351
    %v1353 = vpop.f32.mrf.mxu0
    %v1354 = vadd.f32 %v1136, %v1353
    %1355 = vmatmul.bf16.gmra.mxu0 %v549
    %v1356 = vpop.f32.mrf.mxu0
    %v1357 = vadd.f32 %v1136, %v1356
    %v1358 = vpop.f32.mrf.mxu0
    %v1359 = vadd.f32 %v1136, %v1358
    %1360 = vmatmul.bf16.gmra.mxu0 %v551
    %v1361 = vpop.f32.mrf.mxu0
    %v1362 = vadd.f32 %v1136, %v1361
    %v1363 = vpop.f32.mrf.mxu0
    %v1364 = vadd.f32 %v1136, %v1363
    %1365 = vmatmul.bf16.gmra.mxu0 %v553
    %v1366 = vpop.f32.mrf.mxu0
    %v1367 = vadd.f32 %v1136, %v1366
    %v1368 = vpop.f32.mrf.mxu0
    %v1369 = vadd.f32 %v1136, %v1368
    %1370 = vmatmul.bf16.gmra.mxu0 %v555
    %v1371 = vpop.f32.mrf.mxu0
    %v1372 = vadd.f32 %v1136, %v1371
    %v1373 = vpop.f32.mrf.mxu0
    %v1374 = vadd.f32 %v1136, %v1373
    %1375 = vmatmul.bf16.gmra.mxu0 %v557
    %v1376 = vpop.f32.mrf.mxu0
    %v1377 = vadd.f32 %v1136, %v1376
    %v1378 = vpop.f32.mrf.mxu0
    %v1379 = vadd.f32 %v1136, %v1378
    %1380 = vmatmul.bf16.gmra.mxu0 %v559
    %v1381 = vpop.f32.mrf.mxu0
    %v1382 = vadd.f32 %v1136, %v1381
    %v1383 = vpop.f32.mrf.mxu0
    %v1384 = vadd.f32 %v1136, %v1383
    %1385 = vmatmul.bf16.gmra.mxu0 %v561
    %v1386 = vpop.f32.mrf.mxu0
    %v1387 = vadd.f32 %v1136, %v1386
    %v1388 = vpop.f32.mrf.mxu0
    %v1389 = vadd.f32 %v1136, %v1388
    %1390 = vmatmul.bf16.gmra.mxu0 %v563
    %v1391 = vpop.f32.mrf.mxu0
    %v1392 = vadd.f32 %v1136, %v1391
    %v1393 = vpop.f32.mrf.mxu0
    %v1394 = vadd.f32 %v1136, %v1393
    %1395 = vmatmul.bf16.gmra.mxu0 %v565
    %v1396 = vpop.f32.mrf.mxu0
    %v1397 = vadd.f32 %v1136, %v1396
    %v1398 = vpop.f32.mrf.mxu0
    %v1399 = vadd.f32 %v1136, %v1398
    %1400 = vmatmul.bf16.gmra.mxu0 %v567
    %v1401 = vpop.f32.mrf.mxu0
    %v1402 = vadd.f32 %v1136, %v1401
    %v1403 = vpop.f32.mrf.mxu0
    %v1404 = vadd.f32 %v1136, %v1403
    %1405 = vdwg.mxu0
    %1406 = vmatpush.bf16.msra.mxu0 %v1132
    %1407 = vmatpush.bf16.msra.mxu0 %v1130
    %1408 = vmatpush.bf16.msra.mxu0 %v1128
    %1409 = vmatpush.bf16.msra.mxu0 %v1126
    %1410 = vmatpush.bf16.msra.mxu0 %v1124
    %1411 = vmatpush.bf16.msra.mxu0 %v1122
    %1412 = vmatpush.bf16.msra.mxu0 %v1120
    %1413 = vmatpush.bf16.msra.mxu0 %v1118
    %1414 = vmatmul.bf16.gmra.mxu0 %v538
    %v1415 = vpop.f32.mrf.mxu0
    %v1416 = vadd.f32 %v1327, %v1415
    %v1417 = vpop.f32.mrf.mxu0
    %v1418 = vadd.f32 %v1329, %v1417
    %1419 = vmatmul.bf16.gmra.mxu0 %v540
    %v1420 = vpop.f32.mrf.mxu0
    %v1421 = vadd.f32 %v1332, %v1420
    %v1422 = vpop.f32.mrf.mxu0
    %v1423 = vadd.f32 %v1334, %v1422
    %1424 = vmatmul.bf16.gmra.mxu0 %v542
    %v1425 = vpop.f32.mrf.mxu0
    %v1426 = vadd.f32 %v1337, %v1425
    %v1427 = vpop.f32.mrf.mxu0
    %v1428 = vadd.f32 %v1339, %v1427
    %1429 = vmatmul.bf16.gmra.mxu0 %v544
    %v1430 = vpop.f32.mrf.mxu0
    %v1431 = vadd.f32 %v1342, %v1430
    %v1432 = vpop.f32.mrf.mxu0
    %v1433 = vadd.f32 %v1344, %v1432
    %1434 = vmatmul.bf16.gmra.mxu0 %v546
    %v1435 = vpop.f32.mrf.mxu0
    %v1436 = vadd.f32 %v1347, %v1435
    %v1437 = vpop.f32.mrf.mxu0
    %v1438 = vadd.f32 %v1349, %v1437
    %1439 = vmatmul.bf16.gmra.mxu0 %v548
    %v1440 = vpop.f32.mrf.mxu0
    %v1441 = vadd.f32 %v1352, %v1440
    %v1442 = vpop.f32.mrf.mxu0
    %v1443 = vadd.f32 %v1354, %v1442
    %1444 = vmatmul.bf16.gmra.mxu0 %v550
    %v1445 = vpop.f32.mrf.mxu0
    %v1446 = vadd.f32 %v1357, %v1445
    %v1447 = vpop.f32.mrf.mxu0
    %v1448 = vadd.f32 %v1359, %v1447
    %1449 = vmatmul.bf16.gmra.mxu0 %v552
    %v1450 = vpop.f32.mrf.mxu0
    %v1451 = vadd.f32 %v1362, %v1450
    %v1452 = vpop.f32.mrf.mxu0
    %v1453 = vadd.f32 %v1364, %v1452
    %1454 = vmatmul.bf16.gmra.mxu0 %v554
    %v1455 = vpop.f32.mrf.mxu0
    %v1456 = vadd.f32 %v1367, %v1455
    %v1457 = vpop.f32.mrf.mxu0
    %v1458 = vadd.f32 %v1369, %v1457
    %1459 = vmatmul.bf16.gmra.mxu0 %v556
    %v1460 = vpop.f32.mrf.mxu0
    %v1461 = vadd.f32 %v1372, %v1460
    %v1462 = vpop.f32.mrf.mxu0
    %v1463 = vadd.f32 %v1374, %v1462
    %1464 = vmatmul.bf16.gmra.mxu0 %v558
    %v1465 = vpop.f32.mrf.mxu0
    %v1466 = vadd.f32 %v1377, %v1465
    %v1467 = vpop.f32.mrf.mxu0
    %v1468 = vadd.f32 %v1379, %v1467
    %1469 = vmatmul.bf16.gmra.mxu0 %v560
    %v1470 = vpop.f32.mrf.mxu0
    %v1471 = vadd.f32 %v1382, %v1470
    %v1472 = vpop.f32.mrf.mxu0
    %v1473 = vadd.f32 %v1384, %v1472
    %1474 = vmatmul.bf16.gmra.mxu0 %v562
    %v1475 = vpop.f32.mrf.mxu0
    %v1476 = vadd.f32 %v1387, %v1475
    %v1477 = vpop.f32.mrf.mxu0
    %v1478 = vadd.f32 %v1389, %v1477
    %1479 = vmatmul.bf16.gmra.mxu0 %v564
    %v1480 = vpop.f32.mrf.mxu0
    %v1481 = vadd.f32 %v1392, %v1480
    %v1482 = vpop.f32.mrf.mxu0
    %v1483 = vadd.f32 %v1394, %v1482
    %1484 = vmatmul.bf16.gmra.mxu0 %v566
    %v1485 = vpop.f32.mrf.mxu0
    %v1486 = vadd.f32 %v1397, %v1485
    %v1487 = vpop.f32.mrf.mxu0
    %v1488 = vadd.f32 %v1399, %v1487
    %1489 = vmatmul.bf16.gmra.mxu0 %v568
    %v1490 = vpop.f32.mrf.mxu0
    %v1491 = vadd.f32 %v1402, %v1490
    %v1492 = vpop.f32.mrf.mxu0
    %v1493 = vadd.f32 %v1404, %v1492
    %1494 = vdwg.mxu0
    %v1495 = vld [vmem:[#allocation10] sm:$0xff]
    %v1496 = vld [vmem:[#allocation10 + $0x8] sm:$0xff]
    %v1497 = vld [vmem:[#allocation10 + $0x10] sm:$0xff]
    %v1498 = vld [vmem:[#allocation10 + $0x18] sm:$0xff]
    %v1499 = vld [vmem:[#allocation10 + $0x20] sm:$0xff]
    %v1500 = vld [vmem:[#allocation10 + $0x28] sm:$0xff]
    %v1501 = vld [vmem:[#allocation10 + $0x30] sm:$0xff]
    %v1502 = vld [vmem:[#allocation10 + $0x38] sm:$0xff]
    %v1503 = vld [vmem:[#allocation10 + $0x40] sm:$0xff]
    %v1504 = vld [vmem:[#allocation10 + $0x48] sm:$0xff]
    %v1505 = vld [vmem:[#allocation10 + $0x50] sm:$0xff]
    %v1506 = vld [vmem:[#allocation10 + $0x58] sm:$0xff]
    %v1507 = vld [vmem:[#allocation10 + $0x60] sm:$0xff]
    %v1508 = vld [vmem:[#allocation10 + $0x68] sm:$0xff]
    %v1509 = vld [vmem:[#allocation10 + $0x70] sm:$0xff]
    %v1510 = vld [vmem:[#allocation10 + $0x78] sm:$0xff]
    %v1511 = vld [vmem:[#allocation10 + $0x80] sm:$0xff]
    %v1512 = vld [vmem:[#allocation10 + $0x88] sm:$0xff]
    %v1513 = vld [vmem:[#allocation10 + $0x90] sm:$0xff]
    %v1514 = vld [vmem:[#allocation10 + $0x98] sm:$0xff]
    %v1515 = vld [vmem:[#allocation10 + $0xa0] sm:$0xff]
    %v1516 = vld [vmem:[#allocation10 + $0xa8] sm:$0xff]
    %v1517 = vld [vmem:[#allocation10 + $0xb0] sm:$0xff]
    %v1518 = vld [vmem:[#allocation10 + $0xb8] sm:$0xff]
    %v1519 = vld [vmem:[#allocation10 + $0xc0] sm:$0xff]
    %v1520 = vld [vmem:[#allocation10 + $0xc8] sm:$0xff]
    %v1521 = vld [vmem:[#allocation10 + $0xd0] sm:$0xff]
    %v1522 = vld [vmem:[#allocation10 + $0xd8] sm:$0xff]
    %v1523 = vld [vmem:[#allocation10 + $0xe0] sm:$0xff]
    %v1524 = vld [vmem:[#allocation10 + $0xe8] sm:$0xff]
    %v1525 = vld [vmem:[#allocation10 + $0xf0] sm:$0xff]
    %v1526 = vld [vmem:[#allocation10 + $0xf8] sm:$0xff]
    %v1527 = vmul.f32 %v1416, 1.442695
    %v1528 = vpow.pop %v1527
    %v1529 = vmul.f32 %v1418, 1.442695
    %v1530 = vpow.pop %v1529
    %v1531 = vmul.f32 %v1421, 1.442695
    %v1532 = vpow.pop %v1531
    %v1533 = vmul.f32 %v1423, 1.442695
    %v1534 = vpow.pop %v1533
    %v1535 = vmul.f32 %v1426, 1.442695
    %v1536 = vpow.pop %v1535
    %v1537 = vmul.f32 %v1428, 1.442695
    %v1538 = vpow.pop %v1537
    %v1539 = vmul.f32 %v1431, 1.442695
    %v1540 = vpow.pop %v1539
    %v1541 = vmul.f32 %v1433, 1.442695
    %v1542 = vpow.pop %v1541
    %v1543 = vmul.f32 %v1436, 1.442695
    %v1544 = vpow.pop %v1543
    %v1545 = vmul.f32 %v1438, 1.442695
    %v1546 = vpow.pop %v1545
    %v1547 = vmul.f32 %v1441, 1.442695
    %v1548 = vpow.pop %v1547
    %v1549 = vmul.f32 %v1443, 1.442695
    %v1550 = vpow.pop %v1549
    %v1551 = vmul.f32 %v1446, 1.442695
    %v1552 = vpow.pop %v1551
    %v1553 = vmul.f32 %v1448, 1.442695
    %v1554 = vpow.pop %v1553
    %v1555 = vmul.f32 %v1451, 1.442695
    %v1556 = vpow.pop %v1555
    %v1557 = vmul.f32 %v1453, 1.442695
    %v1558 = vpow.pop %v1557
    %v1559 = vmul.f32 %v1456, 1.442695
    %v1560 = vpow.pop %v1559
    %v1561 = vmul.f32 %v1458, 1.442695
    %v1562 = vpow.pop %v1561
    %v1563 = vmul.f32 %v1461, 1.442695
    %v1564 = vpow.pop %v1563
    %v1565 = vmul.f32 %v1463, 1.442695
    %v1566 = vpow.pop %v1565
    %v1567 = vmul.f32 %v1466, 1.442695
    %v1568 = vpow.pop %v1567
    %v1569 = vmul.f32 %v1468, 1.442695
    %v1570 = vpow.pop %v1569
    %v1571 = vmul.f32 %v1471, 1.442695
    %v1572 = vpow.pop %v1571
    %v1573 = vmul.f32 %v1473, 1.442695
    %v1574 = vpow.pop %v1573
    %v1575 = vmul.f32 %v1476, 1.442695
    %v1576 = vpow.pop %v1575
    %v1577 = vmul.f32 %v1478, 1.442695
    %v1578 = vpow.pop %v1577
    %v1579 = vmul.f32 %v1481, 1.442695
    %v1580 = vpow.pop %v1579
    %v1581 = vmul.f32 %v1483, 1.442695
    %v1582 = vpow.pop %v1581
    %v1583 = vmul.f32 %v1486, 1.442695
    %v1584 = vpow.pop %v1583
    %v1585 = vmul.f32 %v1488, 1.442695
    %v1586 = vpow.pop %v1585
    %v1587 = vmul.f32 %v1491, 1.442695
    %v1588 = vpow.pop %v1587
    %v1589 = vmul.f32 %v1493, 1.442695
    %v1590 = vpow.pop %v1589
    %v1591 = vmul.f32 %v1495, %v1528
    %v1592 = vmul.f32 %v1496, %v1530
    %v1593 = vmul.f32 %v1497, %v1532
    %v1594 = vmul.f32 %v1498, %v1534
    %v1595 = vmul.f32 %v1499, %v1536
    %v1596 = vmul.f32 %v1500, %v1538
    %v1597 = vmul.f32 %v1501, %v1540
    %v1598 = vmul.f32 %v1502, %v1542
    %v1599 = vmul.f32 %v1503, %v1544
    %v1600 = vmul.f32 %v1504, %v1546
    %v1601 = vmul.f32 %v1505, %v1548
    %v1602 = vmul.f32 %v1506, %v1550
    %v1603 = vmul.f32 %v1507, %v1552
    %v1604 = vmul.f32 %v1508, %v1554
    %v1605 = vmul.f32 %v1509, %v1556
    %v1606 = vmul.f32 %v1510, %v1558
    %v1607 = vmul.f32 %v1511, %v1560
    %v1608 = vmul.f32 %v1512, %v1562
    %v1609 = vmul.f32 %v1513, %v1564
    %v1610 = vmul.f32 %v1514, %v1566
    %v1611 = vmul.f32 %v1515, %v1568
    %v1612 = vmul.f32 %v1516, %v1570
    %v1613 = vmul.f32 %v1517, %v1572
    %v1614 = vmul.f32 %v1518, %v1574
    %v1615 = vmul.f32 %v1519, %v1576
    %v1616 = vmul.f32 %v1520, %v1578
    %v1617 = vmul.f32 %v1521, %v1580
    %v1618 = vmul.f32 %v1522, %v1582
    %v1619 = vmul.f32 %v1523, %v1584
    %v1620 = vmul.f32 %v1524, %v1586
    %v1621 = vmul.f32 %v1525, %v1588
    %v1622 = vmul.f32 %v1526, %v1590
    %v1623 = vadd.f32 %v1238, %v1591
    %v1624 = vadd.f32 %v1240, %v1592
    %v1625 = vadd.f32 %v1243, %v1593
    %v1626 = vadd.f32 %v1245, %v1594
    %v1627 = vadd.f32 %v1248, %v1595
    %v1628 = vadd.f32 %v1250, %v1596
    %v1629 = vadd.f32 %v1253, %v1597
    %v1630 = vadd.f32 %v1255, %v1598
    %v1631 = vadd.f32 %v1258, %v1599
    %v1632 = vadd.f32 %v1260, %v1600
    %v1633 = vadd.f32 %v1263, %v1601
    %v1634 = vadd.f32 %v1265, %v1602
    %v1635 = vadd.f32 %v1268, %v1603
    %v1636 = vadd.f32 %v1270, %v1604
    %v1637 = vadd.f32 %v1273, %v1605
    %v1638 = vadd.f32 %v1275, %v1606
    %v1639 = vadd.f32 %v1278, %v1607
    %v1640 = vadd.f32 %v1280, %v1608
    %v1641 = vadd.f32 %v1283, %v1609
    %v1642 = vadd.f32 %v1285, %v1610
    %v1643 = vadd.f32 %v1288, %v1611
    %v1644 = vadd.f32 %v1290, %v1612
    %v1645 = vadd.f32 %v1293, %v1613
    %v1646 = vadd.f32 %v1295, %v1614
    %v1647 = vadd.f32 %v1298, %v1615
    %v1648 = vadd.f32 %v1300, %v1616
    %v1649 = vadd.f32 %v1303, %v1617
    %v1650 = vadd.f32 %v1305, %v1618
    %v1651 = vadd.f32 %v1308, %v1619
    %v1652 = vadd.f32 %v1310, %v1620
    %v1653 = vadd.f32 %v1313, %v1621
    %v1654 = vadd.f32 %v1315, %v1622
    %1655 = vst [vmem:[#allocation11] sm:$0xff] %v1623
    %1656 = vst [vmem:[#allocation11 + $0x8] sm:$0xff] %v1624
    %1657 = vst [vmem:[#allocation11 + $0x10] sm:$0xff] %v1625
    %1658 = vst [vmem:[#allocation11 + $0x18] sm:$0xff] %v1626
    %1659 = vst [vmem:[#allocation11 + $0x20] sm:$0xff] %v1627
    %1660 = vst [vmem:[#allocation11 + $0x28] sm:$0xff] %v1628
    %1661 = vst [vmem:[#allocation11 + $0x30] sm:$0xff] %v1629
    %1662 = vst [vmem:[#allocation11 + $0x38] sm:$0xff] %v1630
    %1663 = vst [vmem:[#allocation11 + $0x40] sm:$0xff] %v1631
    %1664 = vst [vmem:[#allocation11 + $0x48] sm:$0xff] %v1632
    %1665 = vst [vmem:[#allocation11 + $0x50] sm:$0xff] %v1633
    %1666 = vst [vmem:[#allocation11 + $0x58] sm:$0xff] %v1634
    %1667 = vst [vmem:[#allocation11 + $0x60] sm:$0xff] %v1635
    %1668 = vst [vmem:[#allocation11 + $0x68] sm:$0xff] %v1636
    %1669 = vst [vmem:[#allocation11 + $0x70] sm:$0xff] %v1637
    %1670 = vst [vmem:[#allocation11 + $0x78] sm:$0xff] %v1638
    %1671 = vst [vmem:[#allocation11 + $0x80] sm:$0xff] %v1639
    %1672 = vst [vmem:[#allocation11 + $0x88] sm:$0xff] %v1640
    %1673 = vst [vmem:[#allocation11 + $0x90] sm:$0xff] %v1641
    %1674 = vst [vmem:[#allocation11 + $0x98] sm:$0xff] %v1642
    %1675 = vst [vmem:[#allocation11 + $0xa0] sm:$0xff] %v1643
    %1676 = vst [vmem:[#allocation11 + $0xa8] sm:$0xff] %v1644
    %1677 = vst [vmem:[#allocation11 + $0xb0] sm:$0xff] %v1645
    %1678 = vst [vmem:[#allocation11 + $0xb8] sm:$0xff] %v1646
    %1679 = vst [vmem:[#allocation11 + $0xc0] sm:$0xff] %v1647
    %1680 = vst [vmem:[#allocation11 + $0xc8] sm:$0xff] %v1648
    %1681 = vst [vmem:[#allocation11 + $0xd0] sm:$0xff] %v1649
    %1682 = vst [vmem:[#allocation11 + $0xd8] sm:$0xff] %v1650
    %1683 = vst [vmem:[#allocation11 + $0xe0] sm:$0xff] %v1651
    %1684 = vst [vmem:[#allocation11 + $0xe8] sm:$0xff] %v1652
    %1685 = vst [vmem:[#allocation11 + $0xf0] sm:$0xff] %v1653
    %1686 = vst [vmem:[#allocation11 + $0xf8] sm:$0xff] %v1654
    %v1687 = vpack.c.bf16 %v1623, %v1623
    %v1688 = vpack.c.bf16 %v1624, %v1624
    %v1689 = vpack.c.bf16 %v1625, %v1625
    %v1690 = vpack.c.bf16 %v1626, %v1626
    %v1691 = vpack.c.bf16 %v1627, %v1627
    %v1692 = vpack.c.bf16 %v1628, %v1628
    %v1693 = vpack.c.bf16 %v1629, %v1629
    %v1694 = vpack.c.bf16 %v1630, %v1630
    %v1695 = vpack.c.bf16 %v1631, %v1631
    %v1696 = vpack.c.bf16 %v1632, %v1632
    %v1697 = vpack.c.bf16 %v1633, %v1633
    %v1698 = vpack.c.bf16 %v1634, %v1634
    %v1699 = vpack.c.bf16 %v1635, %v1635
    %v1700 = vpack.c.bf16 %v1636, %v1636
    %v1701 = vpack.c.bf16 %v1637, %v1637
    %v1702 = vpack.c.bf16 %v1638, %v1638
    %v1703 = vpack.c.bf16 %v1639, %v1639
    %v1704 = vpack.c.bf16 %v1640, %v1640
    %v1705 = vpack.c.bf16 %v1641, %v1641
    %v1706 = vpack.c.bf16 %v1642, %v1642
    %v1707 = vpack.c.bf16 %v1643, %v1643
    %v1708 = vpack.c.bf16 %v1644, %v1644
    %v1709 = vpack.c.bf16 %v1645, %v1645
    %v1710 = vpack.c.bf16 %v1646, %v1646
    %v1711 = vpack.c.bf16 %v1647, %v1647
    %v1712 = vpack.c.bf16 %v1648, %v1648
    %v1713 = vpack.c.bf16 %v1649, %v1649
    %v1714 = vpack.c.bf16 %v1650, %v1650
    %v1715 = vpack.c.bf16 %v1651, %v1651
    %v1716 = vpack.c.bf16 %v1652, %v1652
    %v1717 = vpack.c.bf16 %v1653, %v1653
    %v1718 = vpack.c.bf16 %v1654, %v1654
    %1719 = vst [vmem:[#allocation12] sm:$0xf] %v1687
    %1720 = vst [vmem:[#allocation12 + $0x4] sm:$0xf] %v1688
    %1721 = vst [vmem:[#allocation12 + $0x8] sm:$0xf] %v1689
    %1722 = vst [vmem:[#allocation12 + $0xc] sm:$0xf] %v1690
    %1723 = vst [vmem:[#allocation12 + $0x10] sm:$0xf] %v1691
    %1724 = vst [vmem:[#allocation12 + $0x14] sm:$0xf] %v1692
    %1725 = vst [vmem:[#allocation12 + $0x18] sm:$0xf] %v1693
    %1726 = vst [vmem:[#allocation12 + $0x1c] sm:$0xf] %v1694
    %1727 = vst [vmem:[#allocation12 + $0x20] sm:$0xf] %v1695
    %1728 = vst [vmem:[#allocation12 + $0x24] sm:$0xf] %v1696
    %1729 = vst [vmem:[#allocation12 + $0x28] sm:$0xf] %v1697
    %1730 = vst [vmem:[#allocation12 + $0x2c] sm:$0xf] %v1698
    %1731 = vst [vmem:[#allocation12 + $0x30] sm:$0xf] %v1699
    %1732 = vst [vmem:[#allocation12 + $0x34] sm:$0xf] %v1700
    %1733 = vst [vmem:[#allocation12 + $0x38] sm:$0xf] %v1701
    %1734 = vst [vmem:[#allocation12 + $0x3c] sm:$0xf] %v1702
    %1735 = vst [vmem:[#allocation12 + $0x40] sm:$0xf] %v1703
    %1736 = vst [vmem:[#allocation12 + $0x44] sm:$0xf] %v1704
    %1737 = vst [vmem:[#allocation12 + $0x48] sm:$0xf] %v1705
    %1738 = vst [vmem:[#allocation12 + $0x4c] sm:$0xf] %v1706
    %1739 = vst [vmem:[#allocation12 + $0x50] sm:$0xf] %v1707
    %1740 = vst [vmem:[#allocation12 + $0x54] sm:$0xf] %v1708
    %1741 = vst [vmem:[#allocation12 + $0x58] sm:$0xf] %v1709
    %1742 = vst [vmem:[#allocation12 + $0x5c] sm:$0xf] %v1710
    %1743 = vst [vmem:[#allocation12 + $0x60] sm:$0xf] %v1711
    %1744 = vst [vmem:[#allocation12 + $0x64] sm:$0xf] %v1712
    %1745 = vst [vmem:[#allocation12 + $0x68] sm:$0xf] %v1713
    %1746 = vst [vmem:[#allocation12 + $0x6c] sm:$0xf] %v1714
    %1747 = vst [vmem:[#allocation12 + $0x70] sm:$0xf] %v1715
    %1748 = vst [vmem:[#allocation12 + $0x74] sm:$0xf] %v1716
    %1749 = vst [vmem:[#allocation12 + $0x78] sm:$0xf] %v1717
    %1750 = vst [vmem:[#allocation12 + $0x7c] sm:$0xf] %v1718
    // Predicated region
    $region50: #{tpu_custom_call.1} parent=1 // pred_check
      _
    $region51: #{tpu_custom_call.1} parent=1 // pred_check_branch
      %1752 = sbr.rel (0) target = $region53
    $region52: #{tpu_custom_call.1} parent=1 // pred_region
      %1754 = vsyncadd [#allocation4], 0
      %s1755 = sshll.u32 [#allocation11], 4
      %s1756 = int_to_ptr.vmem [resolvable:$true] %s1755
      %s1757 = sshll.u32 %s7, 4
      %s1758 = int_to_ptr.hbm [resolvable:$true] %s1757
      %1763 = dma.vmem_to_hbm [thread:$0]  %s1756, 4096, %s1758, [#allocation4], 128, 128, 8
    $region53: #{tpu_custom_call.1} parent=1 // pred_fallthru
      _
    // Predicated region
    $region54: #{tpu_custom_call.1} parent=1 // pred_check
      _
    $region55: #{tpu_custom_call.1} parent=1 // pred_check_branch
      %1765 = sbr.rel (0) target = $region57
    $region56: #{tpu_custom_call.1} parent=1 // pred_region
      %1767 = vsyncadd [#allocation13], 0
      %s1768 = sshll.u32 [#allocation12], 4
      %s1769 = int_to_ptr.vmem [resolvable:$true] %s1768
      %s1770 = sshll.u32 %s8, 4
      %s1771 = int_to_ptr.hbm [resolvable:$true] %s1770
      %1776 = dma.vmem_to_hbm [thread:$0]  %s1769, 2048, %s1771, [#allocation13], 64, 64, 4
    $region57: #{tpu_custom_call.1} parent=1 // pred_fallthru
      _
    // Predicated region
    $region58: #{tpu_custom_call.1} parent=1 // pred_check
      _
    $region59: #{tpu_custom_call.1} parent=1 // pred_check_branch
      %1778 = sbr.rel (0) target = $region61
    $region60: #{tpu_custom_call.1} parent=1 // pred_region
      %1780 = dma.done [#allocation4], 4096
    $region61: #{tpu_custom_call.1} parent=1 // pred_fallthru
      _
    // Predicated region
    $region62: #{tpu_custom_call.1} parent=1 // pred_check
      _
    $region63: #{tpu_custom_call.1} parent=1 // pred_check_branch
      %1782 = sbr.rel (0) target = $region65
    $region64: #{tpu_custom_call.1} parent=1 // pred_region
      %1784 = dma.done [#allocation13], 2048
    $region65: #{tpu_custom_call.1} parent=1 // pred_fallthru
      _
    %1785 = vsyncpa [#allocation3], 1
    %1786 = vsyncpa [#allocation6], 1
    %1787 = vsyncpa [#allocation9], 1
    %1788 = vsyncpa [#allocation4], 1
    %1789 = vsyncpa [#allocation13], 1

</llo_original>
